<compile_context>
chip_gen: v5e
topology: v5e:2x2
jax: 0.10.0
libtpu: 0.0.40
codegen_flags: <defaults>
</compile_context>

<pallas_src>
import functools
import math

import jax
import jax.numpy as jnp
from jax.experimental import pallas as pl
from jax.experimental.pallas import tpu as pltpu


# ----------------------------- kernel helpers ------------------------------

def _layernorm(x, g, b, eps=1e-6):
    mu = jnp.mean(x, axis=-1, keepdims=True)
    var = jnp.mean(jnp.square(x - mu), axis=-1, keepdims=True)
    return (x - mu) * jax.lax.rsqrt(var + eps) * g + b


def _gelu_tanh(x):
    # TODO(synk): PyTorch nn.GELU defaults to exact erf; tanh approximation is
    # used here (EUP-friendly; erf is not reliably lowered by Mosaic).
    c = math.sqrt(2.0 / math.pi)
    return 0.5 * x * (1.0 + jnp.tanh(c * (x + 0.044715 * x * x * x)))


# ----------------------------- fused ViT kernel -----------------------------

def _vit_kernel(patches_ref, patch_w_ref, add_ref,
                ln1_g_ref, ln1_b_ref, w_qkv_ref, b_qkv_ref,
                w_proj_ref, b_proj_ref, ln2_g_ref, ln2_b_ref,
                w_fc1_ref, b_fc1_ref, w_fc2_ref, b_fc2_ref,
                keys_ref, *, depth, num_heads, key_layer, scale):
    """One grid step = one batch element; whole transformer stays in VMEM."""
    T, D = add_ref.shape
    hd = D // num_heads

    # Patch embedding; cls token, positional embedding and patch bias are all
    # folded into the precomputed `add` slab (cls row of `patches` is zero).
    tok = jnp.dot(patches_ref[...], patch_w_ref[...],
                  preferred_element_type=jnp.float32) + add_ref[...]   # (T, D)

    for li in range(depth):
        # ----- attention -----
        h = _layernorm(tok, ln1_g_ref[li:li + 1, :], ln1_b_ref[li:li + 1, :])
        qkv = jnp.dot(h, w_qkv_ref[li], preferred_element_type=jnp.float32)
        qkv = qkv + b_qkv_ref[li:li + 1, :]                            # (T, 3D)

        if li == key_layer:
            # ViTExtractor hook on this block's qkv output, facet='key'.
            keys_ref[...] = qkv[:, D:2 * D]

        q = qkv[:, 0:D] * scale        # fold 1/sqrt(hd) into q, not the scores
        k = qkv[:, D:2 * D]
        v = qkv[:, 2 * D:3 * D]

        w_proj_li = w_proj_ref[li]                                     # (D, D)
        o = jnp.zeros((T, D), jnp.float32)
        for hh in range(num_heads):
            sl = slice(hh * hd, (hh + 1) * hd)
            qh, kh, vh = q[:, sl], k[:, sl], v[:, sl]
            s = jax.lax.dot_general(qh, kh, (((1,), (1,)), ((), ())),
                                    preferred_element_type=jnp.float32)  # (T,T)
            s = s - jnp.max(s, axis=-1, keepdims=True)
            p = jnp.exp(s)
            p = p * pl.reciprocal(jnp.sum(p, axis=-1, keepdims=True),
                                  approx=True)
            oh = jnp.dot(p, vh, preferred_element_type=jnp.float32)     # (T,hd)
            # Head-concat folded into the output projection (linearity).
            o = o + jnp.dot(oh, w_proj_li[sl, :],
                            preferred_element_type=jnp.float32)
        tok = tok + o + b_proj_ref[li:li + 1, :]                  # residual 1

        # ----- MLP -----
        h2 = _layernorm(tok, ln2_g_ref[li:li + 1, :], ln2_b_ref[li:li + 1, :])
        m = jnp.dot(h2, w_fc1_ref[li], preferred_element_type=jnp.float32)
        m = _gelu_tanh(m + b_fc1_ref[li:li + 1, :])
        m = jnp.dot(m, w_fc2_ref[li], preferred_element_type=jnp.float32)
        tok = tok + m + b_fc2_ref[li:li + 1, :]                   # residual 2


# ----------------------------- parameters ----------------------------------

def init_params(key, *, C=3, P=8, D=128, depth=2, num_heads=4, mlp=512,
                num_tokens=5):
    """Deterministic synthetic DINO-ViT weights (no checkpoint load)."""
    del num_heads
    ks = jax.random.split(key, 7)
    nrm = lambda k, shape: 0.02 * jax.random.normal(k, shape, jnp.float32)
    return {
        "patch_w": nrm(ks[0], (C * P * P, D)),
        "patch_b": jnp.zeros((D,), jnp.float32),
        "cls": nrm(ks[1], (D,)),
        "pos": nrm(ks[2], (num_tokens, D)),
        "ln1_g": jnp.ones((depth, D), jnp.float32),
        "ln1_b": jnp.zeros((depth, D), jnp.float32),
        "w_qkv": nrm(ks[3], (depth, D, 3 * D)),
        "b_qkv": jnp.zeros((depth, 3 * D), jnp.float32),
        "w_proj": nrm(ks[4], (depth, D, D)),
        "b_proj": jnp.zeros((depth, D), jnp.float32),
        "ln2_g": jnp.ones((depth, D), jnp.float32),
        "ln2_b": jnp.zeros((depth, D), jnp.float32),
        "w_fc1": nrm(ks[5], (depth, D, mlp)),
        "b_fc1": jnp.zeros((depth, mlp), jnp.float32),
        "w_fc2": nrm(ks[6], (depth, mlp, D)),
        "b_fc2": jnp.zeros((depth, D), jnp.float32),
    }


# ----------------------------- forward pass ---------------------------------

def dino_vit_forward(params, x, *, layers=1, patch=8, stride=8, num_heads=4):
    """Equivalent of DinoViT.forward: per-patch 'key' descriptors of block
    `layers`, shape (B, 1, num_patches, D)."""
    # TODO(synk): resize_shape preprocessing and overlapping stride < patch
    # (with pos-embed interpolation) are not implemented; stride == patch.
    del stride
    B, C, H, W = x.shape
    P = patch
    nH, nW = H // P, W // P
    N = nH * nW
    T = N + 1
    CPP = C * P * P
    D = params["patch_w"].shape[-1]
    mlp = params["w_fc1"].shape[-1]
    depth = params["w_qkv"].shape[0]
    hd = D // num_heads
    if not 0 <= layers < depth:
        raise ValueError("`layers` must index an existing transformer block")

    # im2col unfold (pure layout) plus a zero "cls placeholder" row per batch
    # so the patch-embed matmul covers every token row.
    patches = x.reshape(B, C, nH, P, nW, P)
    patches = jnp.transpose(patches, (0, 2, 4, 1, 3, 5)).reshape(B, N, CPP)
    patches = jnp.concatenate(
        [jnp.zeros((B, 1, CPP), jnp.float32), patches.astype(jnp.float32)],
        axis=1)                                                     # (B, T, CPP)

    # Per-token additive slab: row 0 -> cls + pos[0]; row t>0 -> patch_b+pos[t].
    add = jnp.concatenate(
        [(params["cls"] + params["pos"][0])[None, :],
         params["pos"][1:] + params["patch_b"][None, :]], axis=0)   # (T, D)
    add = jnp.broadcast_to(add[None], (B, T, D))

    kernel = functools.partial(
        _vit_kernel, depth=depth, num_heads=num_heads, key_layer=layers,
        scale=1.0 / math.sqrt(hd))

    def full2(shape):
        return pl.BlockSpec(shape, lambda b: (0, 0))

    def full3(shape):
        return pl.BlockSpec(shape, lambda b: (0, 0, 0))

    def per_batch(shape):
        return pl.BlockSpec((None,) + shape, lambda b: (b, 0, 0))

    keys = pl.pallas_call(
        kernel,
        grid=(B,),
        out_shape=jax.ShapeDtypeStruct((B, T, D), jnp.float32),
        in_specs=[
            per_batch((T, CPP)),                # patches (per-batch block)
            full2((CPP, D)),                    # patch_w (resident)
            per_batch((T, D)),                  # add
            full2((depth, D)),                  # ln1_g
            full2((depth, D)),                  # ln1_b
            full3((depth, D, 3 * D)),           # w_qkv
            full2((depth, 3 * D)),              # b_qkv
            full3((depth, D, D)),               # w_proj
            full2((depth, D)),                  # b_proj
            full2((depth, D)),                  # ln2_g
            full2((depth, D)),                  # ln2_b
            full3((depth, D, mlp)),             # w_fc1
            full2((depth, mlp)),                # b_fc1
            full3((depth, mlp, D)),             # w_fc2
            full2((depth, D)),                  # b_fc2
        ],
        out_specs=per_batch((T, D)),
        compiler_params=pltpu.CompilerParams(
            dimension_semantics=("parallel",)),
    )(patches, params["patch_w"], add,
      params["ln1_g"], params["ln1_b"], params["w_qkv"], params["b_qkv"],
      params["w_proj"], params["b_proj"], params["ln2_g"], params["ln2_b"],
      params["w_fc1"], params["b_fc1"], params["w_fc2"], params["b_fc2"])

    # extract_descriptors(facet='key', bin=False, include_cls=False):
    #   keys (B, nh, t, hd) -> drop cls -> permute(0,2,3,1) -> flatten(d,h)
    #   -> unsqueeze(1)  =>  (B, 1, num_patches, d*h)
    k = keys[:, 1:, :].reshape(B, N, num_heads, hd)
    desc = jnp.transpose(k, (0, 1, 3, 2)).reshape(B, N, num_heads * hd)
    return desc[:, None]


# ----------------------------- pure-JAX reference ---------------------------

def dino_vit_reference(params, x, *, layers=1, patch=8, num_heads=4):
    B, C, H, W = x.shape
    P = patch
    nH, nW = H // P, W // P
    N = nH * nW
    D = params["patch_w"].shape[-1]
    hd = D // num_heads
    depth = params["w_qkv"].shape[0]

    patches = x.reshape(B, C, nH, P, nW, P)
    patches = jnp.transpose(patches, (0, 2, 4, 1, 3, 5)).reshape(B, N, -1)
    tok = patches @ params["patch_w"] + params["patch_b"]
    cls = jnp.broadcast_to(params["cls"][None, None, :], (B, 1, D))
    tok = jnp.concatenate([cls, tok], axis=1) + params["pos"][None]
    T = N + 1

    def ln(v, g, b):
        mu = v.mean(-1, keepdims=True)
        var = jnp.square(v - mu).mean(-1, keepdims=True)
        return (v - mu) * jax.lax.rsqrt(var + 1e-6) * g + b

    keys = None
    for li in range(depth):
        h = ln(tok, params["ln1_g"][li], params["ln1_b"][li])
        qkv = h @ params["w_qkv"][li] + params["b_qkv"][li]
        qkv = qkv.reshape(B, T, 3, num_heads, hd)
        q = jnp.transpose(qkv[:, :, 0], (0, 2, 1, 3))
        k = jnp.transpose(qkv[:, :, 1], (0, 2, 1, 3))
        v = jnp.transpose(qkv[:, :, 2], (0, 2, 1, 3))
        if li == layers:
            keys = k
        s = jnp.einsum("bhqd,bhkd->bhqk", q, k) / math.sqrt(hd)
        p = jax.nn.softmax(s, axis=-1)
        o = jnp.einsum("bhqk,bhkd->bhqd", p, v)
        o = jnp.transpose(o, (0, 2, 1, 3)).reshape(B, T, D)
        tok = tok + o @ params["w_proj"][li] + params["b_proj"][li]
        h2 = ln(tok, params["ln2_g"][li], params["ln2_b"][li])
        m = h2 @ params["w_fc1"][li] + params["b_fc1"][li]
        c = math.sqrt(2.0 / math.pi)
        m = 0.5 * m * (1.0 + jnp.tanh(c * (m + 0.044715 * m ** 3)))
        tok = tok + m @ params["w_fc2"][li] + params["b_fc2"][li]

    kf = keys[:, :, 1:, :]
    desc = jnp.transpose(kf, (0, 2, 3, 1)).reshape(B, N, num_heads * hd)
    return desc[:, None]


# ------------------------------- main ---------------------------------------

if __name__ == "__main__":
    B, C, H, W = 2, 3, 16, 16
    P, STRIDE, D, HEADS, MLP, DEPTH, LAYERS = 8, 8, 128, 4, 512, 2, 1
    num_tokens = (H // P) * (W // P) + 1                  # 4 patches + cls = 5

    root = jax.random.PRNGKey(0)
    k_x, k_p = jax.random.split(root)
    x = jax.random.normal(k_x, (B, C, H, W), jnp.float32)
    params = init_params(k_p, C=C, P=P, D=D, depth=DEPTH, num_heads=HEADS,
                         mlp=MLP, num_tokens=num_tokens)

    fwd = jax.jit(functools.partial(dino_vit_forward, layers=LAYERS, patch=P,
                                    stride=STRIDE, num_heads=HEADS))
    desc = fwd(params, x)
    jax.block_until_ready(desc)

    assert desc.shape == (B, 1, num_tokens - 1, D), desc.shape
    assert bool(jnp.all(jnp.isfinite(desc)))

    with jax.default_matmul_precision("float32"):
        ref = dino_vit_reference(params, x, layers=LAYERS, patch=P,
                                 num_heads=HEADS)
    max_err = float(jnp.max(jnp.abs(desc - ref)))
    assert jnp.allclose(desc, ref, rtol=2e-2, atol=2e-3), max_err
    print("KERNEL_OK")
</pallas_src>

<mosaic_0001>
module attributes {stable_mosaic.version = 11 : i64} {
  func.func @_vit_kernel(%arg0: i32, %arg1: memref<1x5x192xf32, #tpu.memory_space<vmem>>, %arg2: memref<192x128xf32, #tpu.memory_space<vmem>>, %arg3: memref<1x5x128xf32, #tpu.memory_space<vmem>>, %arg4: memref<2x128xf32, #tpu.memory_space<vmem>>, %arg5: memref<2x128xf32, #tpu.memory_space<vmem>>, %arg6: memref<2x128x384xf32, #tpu.memory_space<vmem>>, %arg7: memref<2x384xf32, #tpu.memory_space<vmem>>, %arg8: memref<2x128x128xf32, #tpu.memory_space<vmem>>, %arg9: memref<2x128xf32, #tpu.memory_space<vmem>>, %arg10: memref<2x128xf32, #tpu.memory_space<vmem>>, %arg11: memref<2x128xf32, #tpu.memory_space<vmem>>, %arg12: memref<2x128x512xf32, #tpu.memory_space<vmem>>, %arg13: memref<2x512xf32, #tpu.memory_space<vmem>>, %arg14: memref<2x512x128xf32, #tpu.memory_space<vmem>>, %arg15: memref<2x128xf32, #tpu.memory_space<vmem>>, %arg16: memref<1x5x128xf32, #tpu.memory_space<vmem>>) attributes {dimension_semantics = [#tpu.dimension_semantics<parallel>], iteration_bounds = array<i64: 2>, scalar_prefetch = 0 : i64, scratch_operands = 0 : i64, tpu.core_type = #tpu.core_type<tc>, window_params = [{transform_indices = @transform_0, window_bounds = array<i64: 1, 5, 192>}, {pipeline_mode = #tpu.pipeline_mode<synchronous>, transform_indices = @transform_1, window_bounds = array<i64: 192, 128>}, {transform_indices = @transform_2, window_bounds = array<i64: 1, 5, 128>}, {pipeline_mode = #tpu.pipeline_mode<synchronous>, transform_indices = @transform_3, window_bounds = array<i64: 2, 128>}, {pipeline_mode = #tpu.pipeline_mode<synchronous>, transform_indices = @transform_4, window_bounds = array<i64: 2, 128>}, {pipeline_mode = #tpu.pipeline_mode<synchronous>, transform_indices = @transform_5, window_bounds = array<i64: 2, 128, 384>}, {pipeline_mode = #tpu.pipeline_mode<synchronous>, transform_indices = @transform_6, window_bounds = array<i64: 2, 384>}, {pipeline_mode = #tpu.pipeline_mode<synchronous>, transform_indices = @transform_7, window_bounds = array<i64: 2, 128, 128>}, {pipeline_mode = #tpu.pipeline_mode<synchronous>, transform_indices = @transform_8, window_bounds = array<i64: 2, 128>}, {pipeline_mode = #tpu.pipeline_mode<synchronous>, transform_indices = @transform_9, window_bounds = array<i64: 2, 128>}, {pipeline_mode = #tpu.pipeline_mode<synchronous>, transform_indices = @transform_10, window_bounds = array<i64: 2, 128>}, {pipeline_mode = #tpu.pipeline_mode<synchronous>, transform_indices = @transform_11, window_bounds = array<i64: 2, 128, 512>}, {pipeline_mode = #tpu.pipeline_mode<synchronous>, transform_indices = @transform_12, window_bounds = array<i64: 2, 512>}, {pipeline_mode = #tpu.pipeline_mode<synchronous>, transform_indices = @transform_13, window_bounds = array<i64: 2, 512, 128>}, {pipeline_mode = #tpu.pipeline_mode<synchronous>, transform_indices = @transform_14, window_bounds = array<i64: 2, 128>}, {transform_indices = @transform_15, window_bounds = array<i64: 1, 5, 128>}]} {
    %c0 = arith.constant 0 : index
    %c0_0 = arith.constant 0 : index
    %c0_1 = arith.constant 0 : index
    %0 = vector.load %arg1[%c0, %c0_0, %c0_1] : memref<1x5x192xf32, #tpu.memory_space<vmem>>, vector<1x5x192xf32>
    %1 = vector.shape_cast %0 : vector<1x5x192xf32> to vector<5x192xf32>
    %c0_2 = arith.constant 0 : index
    %c0_3 = arith.constant 0 : index
    %2 = vector.load %arg2[%c0_2, %c0_3] : memref<192x128xf32, #tpu.memory_space<vmem>>, vector<192x128xf32>
    %cst = arith.constant dense<0.000000e+00> : vector<5x128xf32>
    %3 = tpu.matmul %1, %2, %cst {dimension_numbers = #tpu.dot_dimension_numbers<[1], [0], [0], [1], [0, 0, 1, 1], [], []>} : vector<5x192xf32>, vector<192x128xf32>, vector<5x128xf32> -> vector<5x128xf32>
    %c0_4 = arith.constant 0 : index
    %c0_5 = arith.constant 0 : index
    %c0_6 = arith.constant 0 : index
    %4 = vector.load %arg3[%c0_4, %c0_5, %c0_6] : memref<1x5x128xf32, #tpu.memory_space<vmem>>, vector<1x5x128xf32>
    %5 = vector.shape_cast %4 : vector<1x5x128xf32> to vector<5x128xf32>
    %6 = arith.addf %3, %5 : vector<5x128xf32>
    %c0_7 = arith.constant 0 : index
    %c0_8 = arith.constant 0 : index
    %7 = vector.load %arg4[%c0_7, %c0_8] : memref<2x128xf32, #tpu.memory_space<vmem>>, vector<1x128xf32>
    %c0_9 = arith.constant 0 : index
    %c0_10 = arith.constant 0 : index
    %8 = vector.load %arg5[%c0_9, %c0_10] : memref<2x128xf32, #tpu.memory_space<vmem>>, vector<1x128xf32>
    %cst_11 = arith.constant dense<0.000000e+00> : vector<5xf32>
    %9 = vector.multi_reduction <add>, %6, %cst_11 [1] : vector<5x128xf32> to vector<5xf32>
    %10 = vector.shape_cast %9 : vector<5xf32> to vector<5x1xf32>
    %cst_12 = arith.constant 1.280000e+02 : f32
    %11 = vector.broadcast %cst_12 : f32 to vector<5x1xf32>
    %12 = arith.divf %10, %11 : vector<5x1xf32>
    %13 = vector.broadcast %12 : vector<5x1xf32> to vector<5x128xf32>
    %14 = arith.subf %6, %13 : vector<5x128xf32>
    %15 = arith.mulf %14, %14 : vector<5x128xf32>
    %cst_13 = arith.constant dense<0.000000e+00> : vector<5xf32>
    %16 = vector.multi_reduction <add>, %15, %cst_13 [1] : vector<5x128xf32> to vector<5xf32>
    %17 = vector.shape_cast %16 : vector<5xf32> to vector<5x1xf32>
    %cst_14 = arith.constant 1.280000e+02 : f32
    %18 = vector.broadcast %cst_14 : f32 to vector<5x1xf32>
    %19 = arith.divf %17, %18 : vector<5x1xf32>
    %20 = vector.broadcast %12 : vector<5x1xf32> to vector<5x128xf32>
    %21 = arith.subf %6, %20 : vector<5x128xf32>
    %cst_15 = arith.constant 9.99999997E-7 : f32
    %22 = vector.broadcast %cst_15 : f32 to vector<5x1xf32>
    %23 = arith.addf %19, %22 : vector<5x1xf32>
    %24 = math.rsqrt %23 : vector<5x1xf32>
    %25 = vector.broadcast %24 : vector<5x1xf32> to vector<5x128xf32>
    %26 = arith.mulf %21, %25 : vector<5x128xf32>
    %27 = vector.broadcast %7 : vector<1x128xf32> to vector<5x128xf32>
    %28 = arith.mulf %26, %27 : vector<5x128xf32>
    %29 = vector.broadcast %8 : vector<1x128xf32> to vector<5x128xf32>
    %30 = arith.addf %28, %29 : vector<5x128xf32>
    %c0_16 = arith.constant 0 : index
    %c0_17 = arith.constant 0 : index
    %c0_18 = arith.constant 0 : index
    %31 = vector.load %arg6[%c0_16, %c0_17, %c0_18] : memref<2x128x384xf32, #tpu.memory_space<vmem>>, vector<1x128x384xf32>
    %32 = vector.shape_cast %31 : vector<1x128x384xf32> to vector<128x384xf32>
    %cst_19 = arith.constant dense<0.000000e+00> : vector<5x384xf32>
    %33 = tpu.matmul %30, %32, %cst_19 {dimension_numbers = #tpu.dot_dimension_numbers<[1], [0], [0], [1], [0, 0, 1, 1], [], []>} : vector<5x128xf32>, vector<128x384xf32>, vector<5x384xf32> -> vector<5x384xf32>
    %c0_20 = arith.constant 0 : index
    %c0_21 = arith.constant 0 : index
    %34 = vector.load %arg7[%c0_20, %c0_21] : memref<2x384xf32, #tpu.memory_space<vmem>>, vector<1x384xf32>
    %35 = vector.broadcast %34 : vector<1x384xf32> to vector<5x384xf32>
    %36 = arith.addf %33, %35 : vector<5x384xf32>
    %37 = vector.extract_strided_slice %36 {offsets = [0, 0], sizes = [5, 128], strides = [1, 1]} : vector<5x384xf32> to vector<5x128xf32>
    %cst_22 = arith.constant 0.176776692 : f32
    %38 = vector.broadcast %cst_22 : f32 to vector<5x128xf32>
    %39 = arith.mulf %37, %38 : vector<5x128xf32>
    %40 = vector.extract_strided_slice %36 {offsets = [0, 128], sizes = [5, 128], strides = [1, 1]} : vector<5x384xf32> to vector<5x128xf32>
    %41 = vector.extract_strided_slice %36 {offsets = [0, 256], sizes = [5, 128], strides = [1, 1]} : vector<5x384xf32> to vector<5x128xf32>
    %c0_23 = arith.constant 0 : index
    %c0_24 = arith.constant 0 : index
    %c0_25 = arith.constant 0 : index
    %42 = vector.load %arg8[%c0_23, %c0_24, %c0_25] : memref<2x128x128xf32, #tpu.memory_space<vmem>>, vector<1x128x128xf32>
    %43 = vector.shape_cast %42 : vector<1x128x128xf32> to vector<128x128xf32>
    %cst_26 = arith.constant 0.000000e+00 : f32
    %44 = vector.broadcast %cst_26 : f32 to vector<5x128xf32>
    %45 = vector.extract_strided_slice %39 {offsets = [0, 0], sizes = [5, 32], strides = [1, 1]} : vector<5x128xf32> to vector<5x32xf32>
    %46 = vector.extract_strided_slice %40 {offsets = [0, 0], sizes = [5, 32], strides = [1, 1]} : vector<5x128xf32> to vector<5x32xf32>
    %47 = vector.extract_strided_slice %41 {offsets = [0, 0], sizes = [5, 32], strides = [1, 1]} : vector<5x128xf32> to vector<5x32xf32>
    %cst_27 = arith.constant dense<0.000000e+00> : vector<5x5xf32>
    %48 = tpu.matmul %45, %46, %cst_27 {dimension_numbers = #tpu.dot_dimension_numbers<[1], [1], [0], [0], [0, 0, 1, 0], [], []>} : vector<5x32xf32>, vector<5x32xf32>, vector<5x5xf32> -> vector<5x5xf32>
    %cst_28 = arith.constant dense<0xFF800000> : vector<5xf32>
    %49 = vector.multi_reduction <maximumf>, %48, %cst_28 [1] : vector<5x5xf32> to vector<5xf32>
    %50 = vector.shape_cast %49 : vector<5xf32> to vector<5x1xf32>
    %51 = vector.broadcast %50 : vector<5x1xf32> to vector<5x5xf32>
    %52 = arith.subf %48, %51 : vector<5x5xf32>
    %53 = math.exp %52 : vector<5x5xf32>
    %cst_29 = arith.constant dense<0.000000e+00> : vector<5xf32>
    %54 = vector.multi_reduction <add>, %53, %cst_29 [1] : vector<5x5xf32> to vector<5xf32>
    %55 = vector.shape_cast %54 : vector<5xf32> to vector<5x1xf32>
    %56 = tpu.reciprocal %55 {approx = true} : vector<5x1xf32> -> vector<5x1xf32>
    %57 = vector.broadcast %56 : vector<5x1xf32> to vector<5x5xf32>
    %58 = arith.mulf %53, %57 : vector<5x5xf32>
    %cst_30 = arith.constant dense<0.000000e+00> : vector<5x32xf32>
    %59 = tpu.matmul %58, %47, %cst_30 {dimension_numbers = #tpu.dot_dimension_numbers<[1], [0], [0], [1], [0, 0, 1, 1], [], []>} : vector<5x5xf32>, vector<5x32xf32>, vector<5x32xf32> -> vector<5x32xf32>
    %60 = vector.extract_strided_slice %43 {offsets = [0, 0], sizes = [32, 128], strides = [1, 1]} : vector<128x128xf32> to vector<32x128xf32>
    %cst_31 = arith.constant dense<0.000000e+00> : vector<5x128xf32>
    %61 = tpu.matmul %59, %60, %cst_31 {dimension_numbers = #tpu.dot_dimension_numbers<[1], [0], [0], [1], [0, 0, 1, 1], [], []>} : vector<5x32xf32>, vector<32x128xf32>, vector<5x128xf32> -> vector<5x128xf32>
    %62 = arith.addf %44, %61 : vector<5x128xf32>
    %63 = vector.extract_strided_slice %39 {offsets = [0, 32], sizes = [5, 32], strides = [1, 1]} : vector<5x128xf32> to vector<5x32xf32>
    %64 = vector.extract_strided_slice %40 {offsets = [0, 32], sizes = [5, 32], strides = [1, 1]} : vector<5x128xf32> to vector<5x32xf32>
    %65 = vector.extract_strided_slice %41 {offsets = [0, 32], sizes = [5, 32], strides = [1, 1]} : vector<5x128xf32> to vector<5x32xf32>
    %cst_32 = arith.constant dense<0.000000e+00> : vector<5x5xf32>
    %66 = tpu.matmul %63, %64, %cst_32 {dimension_numbers = #tpu.dot_dimension_numbers<[1], [1], [0], [0], [0, 0, 1, 0], [], []>} : vector<5x32xf32>, vector<5x32xf32>, vector<5x5xf32> -> vector<5x5xf32>
    %cst_33 = arith.constant dense<0xFF800000> : vector<5xf32>
    %67 = vector.multi_reduction <maximumf>, %66, %cst_33 [1] : vector<5x5xf32> to vector<5xf32>
    %68 = vector.shape_cast %67 : vector<5xf32> to vector<5x1xf32>
    %69 = vector.broadcast %68 : vector<5x1xf32> to vector<5x5xf32>
    %70 = arith.subf %66, %69 : vector<5x5xf32>
    %71 = math.exp %70 : vector<5x5xf32>
    %cst_34 = arith.constant dense<0.000000e+00> : vector<5xf32>
    %72 = vector.multi_reduction <add>, %71, %cst_34 [1] : vector<5x5xf32> to vector<5xf32>
    %73 = vector.shape_cast %72 : vector<5xf32> to vector<5x1xf32>
    %74 = tpu.reciprocal %73 {approx = true} : vector<5x1xf32> -> vector<5x1xf32>
    %75 = vector.broadcast %74 : vector<5x1xf32> to vector<5x5xf32>
    %76 = arith.mulf %71, %75 : vector<5x5xf32>
    %cst_35 = arith.constant dense<0.000000e+00> : vector<5x32xf32>
    %77 = tpu.matmul %76, %65, %cst_35 {dimension_numbers = #tpu.dot_dimension_numbers<[1], [0], [0], [1], [0, 0, 1, 1], [], []>} : vector<5x5xf32>, vector<5x32xf32>, vector<5x32xf32> -> vector<5x32xf32>
    %78 = vector.extract_strided_slice %43 {offsets = [32, 0], sizes = [32, 128], strides = [1, 1]} : vector<128x128xf32> to vector<32x128xf32>
    %cst_36 = arith.constant dense<0.000000e+00> : vector<5x128xf32>
    %79 = tpu.matmul %77, %78, %cst_36 {dimension_numbers = #tpu.dot_dimension_numbers<[1], [0], [0], [1], [0, 0, 1, 1], [], []>} : vector<5x32xf32>, vector<32x128xf32>, vector<5x128xf32> -> vector<5x128xf32>
    %80 = arith.addf %62, %79 : vector<5x128xf32>
    %81 = vector.extract_strided_slice %39 {offsets = [0, 64], sizes = [5, 32], strides = [1, 1]} : vector<5x128xf32> to vector<5x32xf32>
    %82 = vector.extract_strided_slice %40 {offsets = [0, 64], sizes = [5, 32], strides = [1, 1]} : vector<5x128xf32> to vector<5x32xf32>
    %83 = vector.extract_strided_slice %41 {offsets = [0, 64], sizes = [5, 32], strides = [1, 1]} : vector<5x128xf32> to vector<5x32xf32>
    %cst_37 = arith.constant dense<0.000000e+00> : vector<5x5xf32>
    %84 = tpu.matmul %81, %82, %cst_37 {dimension_numbers = #tpu.dot_dimension_numbers<[1], [1], [0], [0], [0, 0, 1, 0], [], []>} : vector<5x32xf32>, vector<5x32xf32>, vector<5x5xf32> -> vector<5x5xf32>
    %cst_38 = arith.constant dense<0xFF800000> : vector<5xf32>
    %85 = vector.multi_reduction <maximumf>, %84, %cst_38 [1] : vector<5x5xf32> to vector<5xf32>
    %86 = vector.shape_cast %85 : vector<5xf32> to vector<5x1xf32>
    %87 = vector.broadcast %86 : vector<5x1xf32> to vector<5x5xf32>
    %88 = arith.subf %84, %87 : vector<5x5xf32>
    %89 = math.exp %88 : vector<5x5xf32>
    %cst_39 = arith.constant dense<0.000000e+00> : vector<5xf32>
    %90 = vector.multi_reduction <add>, %89, %cst_39 [1] : vector<5x5xf32> to vector<5xf32>
    %91 = vector.shape_cast %90 : vector<5xf32> to vector<5x1xf32>
    %92 = tpu.reciprocal %91 {approx = true} : vector<5x1xf32> -> vector<5x1xf32>
    %93 = vector.broadcast %92 : vector<5x1xf32> to vector<5x5xf32>
    %94 = arith.mulf %89, %93 : vector<5x5xf32>
    %cst_40 = arith.constant dense<0.000000e+00> : vector<5x32xf32>
    %95 = tpu.matmul %94, %83, %cst_40 {dimension_numbers = #tpu.dot_dimension_numbers<[1], [0], [0], [1], [0, 0, 1, 1], [], []>} : vector<5x5xf32>, vector<5x32xf32>, vector<5x32xf32> -> vector<5x32xf32>
    %96 = vector.extract_strided_slice %43 {offsets = [64, 0], sizes = [32, 128], strides = [1, 1]} : vector<128x128xf32> to vector<32x128xf32>
    %cst_41 = arith.constant dense<0.000000e+00> : vector<5x128xf32>
    %97 = tpu.matmul %95, %96, %cst_41 {dimension_numbers = #tpu.dot_dimension_numbers<[1], [0], [0], [1], [0, 0, 1, 1], [], []>} : vector<5x32xf32>, vector<32x128xf32>, vector<5x128xf32> -> vector<5x128xf32>
    %98 = arith.addf %80, %97 : vector<5x128xf32>
    %99 = vector.extract_strided_slice %39 {offsets = [0, 96], sizes = [5, 32], strides = [1, 1]} : vector<5x128xf32> to vector<5x32xf32>
    %100 = vector.extract_strided_slice %40 {offsets = [0, 96], sizes = [5, 32], strides = [1, 1]} : vector<5x128xf32> to vector<5x32xf32>
    %101 = vector.extract_strided_slice %41 {offsets = [0, 96], sizes = [5, 32], strides = [1, 1]} : vector<5x128xf32> to vector<5x32xf32>
    %cst_42 = arith.constant dense<0.000000e+00> : vector<5x5xf32>
    %102 = tpu.matmul %99, %100, %cst_42 {dimension_numbers = #tpu.dot_dimension_numbers<[1], [1], [0], [0], [0, 0, 1, 0], [], []>} : vector<5x32xf32>, vector<5x32xf32>, vector<5x5xf32> -> vector<5x5xf32>
    %cst_43 = arith.constant dense<0xFF800000> : vector<5xf32>
    %103 = vector.multi_reduction <maximumf>, %102, %cst_43 [1] : vector<5x5xf32> to vector<5xf32>
    %104 = vector.shape_cast %103 : vector<5xf32> to vector<5x1xf32>
    %105 = vector.broadcast %104 : vector<5x1xf32> to vector<5x5xf32>
    %106 = arith.subf %102, %105 : vector<5x5xf32>
    %107 = math.exp %106 : vector<5x5xf32>
    %cst_44 = arith.constant dense<0.000000e+00> : vector<5xf32>
    %108 = vector.multi_reduction <add>, %107, %cst_44 [1] : vector<5x5xf32> to vector<5xf32>
    %109 = vector.shape_cast %108 : vector<5xf32> to vector<5x1xf32>
    %110 = tpu.reciprocal %109 {approx = true} : vector<5x1xf32> -> vector<5x1xf32>
    %111 = vector.broadcast %110 : vector<5x1xf32> to vector<5x5xf32>
    %112 = arith.mulf %107, %111 : vector<5x5xf32>
    %cst_45 = arith.constant dense<0.000000e+00> : vector<5x32xf32>
    %113 = tpu.matmul %112, %101, %cst_45 {dimension_numbers = #tpu.dot_dimension_numbers<[1], [0], [0], [1], [0, 0, 1, 1], [], []>} : vector<5x5xf32>, vector<5x32xf32>, vector<5x32xf32> -> vector<5x32xf32>
    %114 = vector.extract_strided_slice %43 {offsets = [96, 0], sizes = [32, 128], strides = [1, 1]} : vector<128x128xf32> to vector<32x128xf32>
    %cst_46 = arith.constant dense<0.000000e+00> : vector<5x128xf32>
    %115 = tpu.matmul %113, %114, %cst_46 {dimension_numbers = #tpu.dot_dimension_numbers<[1], [0], [0], [1], [0, 0, 1, 1], [], []>} : vector<5x32xf32>, vector<32x128xf32>, vector<5x128xf32> -> vector<5x128xf32>
    %116 = arith.addf %98, %115 : vector<5x128xf32>
    %117 = arith.addf %6, %116 : vector<5x128xf32>
    %c0_47 = arith.constant 0 : index
    %c0_48 = arith.constant 0 : index
    %118 = vector.load %arg9[%c0_47, %c0_48] : memref<2x128xf32, #tpu.memory_space<vmem>>, vector<1x128xf32>
    %119 = vector.broadcast %118 : vector<1x128xf32> to vector<5x128xf32>
    %120 = arith.addf %117, %119 : vector<5x128xf32>
    %c0_49 = arith.constant 0 : index
    %c0_50 = arith.constant 0 : index
    %121 = vector.load %arg10[%c0_49, %c0_50] : memref<2x128xf32, #tpu.memory_space<vmem>>, vector<1x128xf32>
    %c0_51 = arith.constant 0 : index
    %c0_52 = arith.constant 0 : index
    %122 = vector.load %arg11[%c0_51, %c0_52] : memref<2x128xf32, #tpu.memory_space<vmem>>, vector<1x128xf32>
    %cst_53 = arith.constant dense<0.000000e+00> : vector<5xf32>
    %123 = vector.multi_reduction <add>, %120, %cst_53 [1] : vector<5x128xf32> to vector<5xf32>
    %124 = vector.shape_cast %123 : vector<5xf32> to vector<5x1xf32>
    %cst_54 = arith.constant 1.280000e+02 : f32
    %125 = vector.broadcast %cst_54 : f32 to vector<5x1xf32>
    %126 = arith.divf %124, %125 : vector<5x1xf32>
    %127 = vector.broadcast %126 : vector<5x1xf32> to vector<5x128xf32>
    %128 = arith.subf %120, %127 : vector<5x128xf32>
    %129 = arith.mulf %128, %128 : vector<5x128xf32>
    %cst_55 = arith.constant dense<0.000000e+00> : vector<5xf32>
    %130 = vector.multi_reduction <add>, %129, %cst_55 [1] : vector<5x128xf32> to vector<5xf32>
    %131 = vector.shape_cast %130 : vector<5xf32> to vector<5x1xf32>
    %cst_56 = arith.constant 1.280000e+02 : f32
    %132 = vector.broadcast %cst_56 : f32 to vector<5x1xf32>
    %133 = arith.divf %131, %132 : vector<5x1xf32>
    %134 = vector.broadcast %126 : vector<5x1xf32> to vector<5x128xf32>
    %135 = arith.subf %120, %134 : vector<5x128xf32>
    %cst_57 = arith.constant 9.99999997E-7 : f32
    %136 = vector.broadcast %cst_57 : f32 to vector<5x1xf32>
    %137 = arith.addf %133, %136 : vector<5x1xf32>
    %138 = math.rsqrt %137 : vector<5x1xf32>
    %139 = vector.broadcast %138 : vector<5x1xf32> to vector<5x128xf32>
    %140 = arith.mulf %135, %139 : vector<5x128xf32>
    %141 = vector.broadcast %121 : vector<1x128xf32> to vector<5x128xf32>
    %142 = arith.mulf %140, %141 : vector<5x128xf32>
    %143 = vector.broadcast %122 : vector<1x128xf32> to vector<5x128xf32>
    %144 = arith.addf %142, %143 : vector<5x128xf32>
    %c0_58 = arith.constant 0 : index
    %c0_59 = arith.constant 0 : index
    %c0_60 = arith.constant 0 : index
    %145 = vector.load %arg12[%c0_58, %c0_59, %c0_60] : memref<2x128x512xf32, #tpu.memory_space<vmem>>, vector<1x128x512xf32>
    %146 = vector.shape_cast %145 : vector<1x128x512xf32> to vector<128x512xf32>
    %cst_61 = arith.constant dense<0.000000e+00> : vector<5x512xf32>
    %147 = tpu.matmul %144, %146, %cst_61 {dimension_numbers = #tpu.dot_dimension_numbers<[1], [0], [0], [1], [0, 0, 1, 1], [], []>} : vector<5x128xf32>, vector<128x512xf32>, vector<5x512xf32> -> vector<5x512xf32>
    %c0_62 = arith.constant 0 : index
    %c0_63 = arith.constant 0 : index
    %148 = vector.load %arg13[%c0_62, %c0_63] : memref<2x512xf32, #tpu.memory_space<vmem>>, vector<1x512xf32>
    %149 = vector.broadcast %148 : vector<1x512xf32> to vector<5x512xf32>
    %150 = arith.addf %147, %149 : vector<5x512xf32>
    %cst_64 = arith.constant 5.000000e-01 : f32
    %151 = vector.broadcast %cst_64 : f32 to vector<5x512xf32>
    %152 = arith.mulf %151, %150 : vector<5x512xf32>
    %cst_65 = arith.constant 4.471500e-02 : f32
    %153 = vector.broadcast %cst_65 : f32 to vector<5x512xf32>
    %154 = arith.mulf %153, %150 : vector<5x512xf32>
    %155 = arith.mulf %154, %150 : vector<5x512xf32>
    %156 = arith.mulf %155, %150 : vector<5x512xf32>
    %157 = arith.addf %150, %156 : vector<5x512xf32>
    %cst_66 = arith.constant 0.797884583 : f32
    %158 = vector.broadcast %cst_66 : f32 to vector<5x512xf32>
    %159 = arith.mulf %158, %157 : vector<5x512xf32>
    %160 = math.tanh %159 : vector<5x512xf32>
    %cst_67 = arith.constant 1.000000e+00 : f32
    %161 = vector.broadcast %cst_67 : f32 to vector<5x512xf32>
    %162 = arith.addf %161, %160 : vector<5x512xf32>
    %163 = arith.mulf %152, %162 : vector<5x512xf32>
    %c0_68 = arith.constant 0 : index
    %c0_69 = arith.constant 0 : index
    %c0_70 = arith.constant 0 : index
    %164 = vector.load %arg14[%c0_68, %c0_69, %c0_70] : memref<2x512x128xf32, #tpu.memory_space<vmem>>, vector<1x512x128xf32>
    %165 = vector.shape_cast %164 : vector<1x512x128xf32> to vector<512x128xf32>
    %cst_71 = arith.constant dense<0.000000e+00> : vector<5x128xf32>
    %166 = tpu.matmul %163, %165, %cst_71 {dimension_numbers = #tpu.dot_dimension_numbers<[1], [0], [0], [1], [0, 0, 1, 1], [], []>} : vector<5x512xf32>, vector<512x128xf32>, vector<5x128xf32> -> vector<5x128xf32>
    %167 = arith.addf %120, %166 : vector<5x128xf32>
    %c0_72 = arith.constant 0 : index
    %c0_73 = arith.constant 0 : index
    %168 = vector.load %arg15[%c0_72, %c0_73] : memref<2x128xf32, #tpu.memory_space<vmem>>, vector<1x128xf32>
    %169 = vector.broadcast %168 : vector<1x128xf32> to vector<5x128xf32>
    %170 = arith.addf %167, %169 : vector<5x128xf32>
    %c1 = arith.constant 1 : index
    %c0_74 = arith.constant 0 : index
    %171 = vector.load %arg4[%c1, %c0_74] : memref<2x128xf32, #tpu.memory_space<vmem>>, vector<1x128xf32>
    %c1_75 = arith.constant 1 : index
    %c0_76 = arith.constant 0 : index
    %172 = vector.load %arg5[%c1_75, %c0_76] : memref<2x128xf32, #tpu.memory_space<vmem>>, vector<1x128xf32>
    %cst_77 = arith.constant dense<0.000000e+00> : vector<5xf32>
    %173 = vector.multi_reduction <add>, %170, %cst_77 [1] : vector<5x128xf32> to vector<5xf32>
    %174 = vector.shape_cast %173 : vector<5xf32> to vector<5x1xf32>
    %cst_78 = arith.constant 1.280000e+02 : f32
    %175 = vector.broadcast %cst_78 : f32 to vector<5x1xf32>
    %176 = arith.divf %174, %175 : vector<5x1xf32>
    %177 = vector.broadcast %176 : vector<5x1xf32> to vector<5x128xf32>
    %178 = arith.subf %170, %177 : vector<5x128xf32>
    %179 = arith.mulf %178, %178 : vector<5x128xf32>
    %cst_79 = arith.constant dense<0.000000e+00> : vector<5xf32>
    %180 = vector.multi_reduction <add>, %179, %cst_79 [1] : vector<5x128xf32> to vector<5xf32>
    %181 = vector.shape_cast %180 : vector<5xf32> to vector<5x1xf32>
    %cst_80 = arith.constant 1.280000e+02 : f32
    %182 = vector.broadcast %cst_80 : f32 to vector<5x1xf32>
    %183 = arith.divf %181, %182 : vector<5x1xf32>
    %184 = vector.broadcast %176 : vector<5x1xf32> to vector<5x128xf32>
    %185 = arith.subf %170, %184 : vector<5x128xf32>
    %cst_81 = arith.constant 9.99999997E-7 : f32
    %186 = vector.broadcast %cst_81 : f32 to vector<5x1xf32>
    %187 = arith.addf %183, %186 : vector<5x1xf32>
    %188 = math.rsqrt %187 : vector<5x1xf32>
    %189 = vector.broadcast %188 : vector<5x1xf32> to vector<5x128xf32>
    %190 = arith.mulf %185, %189 : vector<5x128xf32>
    %191 = vector.broadcast %171 : vector<1x128xf32> to vector<5x128xf32>
    %192 = arith.mulf %190, %191 : vector<5x128xf32>
    %193 = vector.broadcast %172 : vector<1x128xf32> to vector<5x128xf32>
    %194 = arith.addf %192, %193 : vector<5x128xf32>
    %c1_82 = arith.constant 1 : index
    %c0_83 = arith.constant 0 : index
    %c0_84 = arith.constant 0 : index
    %195 = vector.load %arg6[%c1_82, %c0_83, %c0_84] : memref<2x128x384xf32, #tpu.memory_space<vmem>>, vector<1x128x384xf32>
    %196 = vector.shape_cast %195 : vector<1x128x384xf32> to vector<128x384xf32>
    %cst_85 = arith.constant dense<0.000000e+00> : vector<5x384xf32>
    %197 = tpu.matmul %194, %196, %cst_85 {dimension_numbers = #tpu.dot_dimension_numbers<[1], [0], [0], [1], [0, 0, 1, 1], [], []>} : vector<5x128xf32>, vector<128x384xf32>, vector<5x384xf32> -> vector<5x384xf32>
    %c1_86 = arith.constant 1 : index
    %c0_87 = arith.constant 0 : index
    %198 = vector.load %arg7[%c1_86, %c0_87] : memref<2x384xf32, #tpu.memory_space<vmem>>, vector<1x384xf32>
    %199 = vector.broadcast %198 : vector<1x384xf32> to vector<5x384xf32>
    %200 = arith.addf %197, %199 : vector<5x384xf32>
    %201 = vector.extract_strided_slice %200 {offsets = [0, 128], sizes = [5, 128], strides = [1, 1]} : vector<5x384xf32> to vector<5x128xf32>
    %c0_88 = arith.constant 0 : index
    %c0_89 = arith.constant 0 : index
    %c0_90 = arith.constant 0 : index
    %202 = vector.load %arg16[%c0_88, %c0_89, %c0_90] : memref<1x5x128xf32, #tpu.memory_space<vmem>>, vector<1x5x128xf32>
    %203 = vector.shape_cast %202 : vector<1x5x128xf32> to vector<5x128xf32>
    %204 = vector.shape_cast %201 : vector<5x128xf32> to vector<1x5x128xf32>
    tpu.vector_store %arg16[%c0_88, %c0_89, %c0_90], %204 {strides = array<i32>} : memref<1x5x128xf32, #tpu.memory_space<vmem>>, vector<1x5x128xf32>,
    return
  }
  func.func @transform_0(%arg0: i32) -> (i32, i32, i32) {
    %c0_i32 = arith.constant 0 : i32
    %c0_i32_0 = arith.constant 0 : i32
    %c0_i32_1 = arith.constant 0 : i32
    return %arg0, %c0_i32, %c0_i32_0 : i32, i32, i32
  }
  func.func @transform_1(%arg0: i32) -> (i32, i32) {
    %c0_i32 = arith.constant 0 : i32
    %c0_i32_0 = arith.constant 0 : i32
    %c0_i32_1 = arith.constant 0 : i32
    return %c0_i32, %c0_i32_0 : i32, i32
  }
  func.func @transform_2(%arg0: i32) -> (i32, i32, i32) {
    %c0_i32 = arith.constant 0 : i32
    %c0_i32_0 = arith.constant 0 : i32
    %c0_i32_1 = arith.constant 0 : i32
    return %arg0, %c0_i32, %c0_i32_0 : i32, i32, i32
  }
  func.func @transform_3(%arg0: i32) -> (i32, i32) {
    %c0_i32 = arith.constant 0 : i32
    %c0_i32_0 = arith.constant 0 : i32
    %c0_i32_1 = arith.constant 0 : i32
    return %c0_i32, %c0_i32_0 : i32, i32
  }
  func.func @transform_4(%arg0: i32) -> (i32, i32) {
    %c0_i32 = arith.constant 0 : i32
    %c0_i32_0 = arith.constant 0 : i32
    %c0_i32_1 = arith.constant 0 : i32
    return %c0_i32, %c0_i32_0 : i32, i32
  }
  func.func @transform_5(%arg0: i32) -> (i32, i32, i32) {
    %c0_i32 = arith.constant 0 : i32
    %c0_i32_0 = arith.constant 0 : i32
    %c0_i32_1 = arith.constant 0 : i32
    %c0_i32_2 = arith.constant 0 : i32
    return %c0_i32, %c0_i32_0, %c0_i32_1 : i32, i32, i32
  }
  func.func @transform_6(%arg0: i32) -> (i32, i32) {
    %c0_i32 = arith.constant 0 : i32
    %c0_i32_0 = arith.constant 0 : i32
    %c0_i32_1 = arith.constant 0 : i32
    return %c0_i32, %c0_i32_0 : i32, i32
  }
  func.func @transform_7(%arg0: i32) -> (i32, i32, i32) {
    %c0_i32 = arith.constant 0 : i32
    %c0_i32_0 = arith.constant 0 : i32
    %c0_i32_1 = arith.constant 0 : i32
    %c0_i32_2 = arith.constant 0 : i32
    return %c0_i32, %c0_i32_0, %c0_i32_1 : i32, i32, i32
  }
  func.func @transform_8(%arg0: i32) -> (i32, i32) {
    %c0_i32 = arith.constant 0 : i32
    %c0_i32_0 = arith.constant 0 : i32
    %c0_i32_1 = arith.constant 0 : i32
    return %c0_i32, %c0_i32_0 : i32, i32
  }
  func.func @transform_9(%arg0: i32) -> (i32, i32) {
    %c0_i32 = arith.constant 0 : i32
    %c0_i32_0 = arith.constant 0 : i32
    %c0_i32_1 = arith.constant 0 : i32
    return %c0_i32, %c0_i32_0 : i32, i32
  }
  func.func @transform_10(%arg0: i32) -> (i32, i32) {
    %c0_i32 = arith.constant 0 : i32
    %c0_i32_0 = arith.constant 0 : i32
    %c0_i32_1 = arith.constant 0 : i32
    return %c0_i32, %c0_i32_0 : i32, i32
  }
  func.func @transform_11(%arg0: i32) -> (i32, i32, i32) {
    %c0_i32 = arith.constant 0 : i32
    %c0_i32_0 = arith.constant 0 : i32
    %c0_i32_1 = arith.constant 0 : i32
    %c0_i32_2 = arith.constant 0 : i32
    return %c0_i32, %c0_i32_0, %c0_i32_1 : i32, i32, i32
  }
  func.func @transform_12(%arg0: i32) -> (i32, i32) {
    %c0_i32 = arith.constant 0 : i32
    %c0_i32_0 = arith.constant 0 : i32
    %c0_i32_1 = arith.constant 0 : i32
    return %c0_i32, %c0_i32_0 : i32, i32
  }
  func.func @transform_13(%arg0: i32) -> (i32, i32, i32) {
    %c0_i32 = arith.constant 0 : i32
    %c0_i32_0 = arith.constant 0 : i32
    %c0_i32_1 = arith.constant 0 : i32
    %c0_i32_2 = arith.constant 0 : i32
    return %c0_i32, %c0_i32_0, %c0_i32_1 : i32, i32, i32
  }
  func.func @transform_14(%arg0: i32) -> (i32, i32) {
    %c0_i32 = arith.constant 0 : i32
    %c0_i32_0 = arith.constant 0 : i32
    %c0_i32_1 = arith.constant 0 : i32
    return %c0_i32, %c0_i32_0 : i32, i32
  }
  func.func @transform_15(%arg0: i32) -> (i32, i32, i32) {
    %c0_i32 = arith.constant 0 : i32
    %c0_i32_0 = arith.constant 0 : i32
    %c0_i32_1 = arith.constant 0 : i32
    return %arg0, %c0_i32, %c0_i32_0 : i32, i32, i32
  }
}

</mosaic_0001>

<llo_original>
// kernel: dino_vit_forward.1
$region0: #{dino_vit_forward.1}
  #allocation0 [shape = 'u32[]', space=smem, size = 0x4, offset = 0x4, fixed_abs, tag = 'smem constant byte address 0x4 - core index']
  #allocation1 [shape = 'u32[72,128]{1,0:T(1,128)}', space=vmem, size = 0x9000, scoped, tag = 'internal scratch']
  %s0 = inlined_call_operand.vmem [shape: f32[2,5,192], index: 0, kind: input, shape index: {}]
  %s1 = inlined_call_operand.hbm [shape: f32[192,128], index: 1, kind: input, shape index: {}]
  %s2 = inlined_call_operand.vmem [shape: f32[2,5,128], index: 2, kind: input, shape index: {}]
  %s3 = inlined_call_operand.vmem [shape: f32[2,128], index: 3, kind: input, shape index: {}]
  %s4 = inlined_call_operand.vmem [shape: f32[2,128], index: 4, kind: input, shape index: {}]
  %s5 = inlined_call_operand.vmem [shape: f32[2,128,384], index: 5, kind: input, shape index: {}]
  %s6 = inlined_call_operand.vmem [shape: f32[2,384], index: 6, kind: input, shape index: {}]
  %s7 = inlined_call_operand.hbm [shape: f32[2,128,128], index: 7, kind: input, shape index: {}]
  %s8 = inlined_call_operand.vmem [shape: f32[2,128], index: 8, kind: input, shape index: {}]
  %s9 = inlined_call_operand.vmem [shape: f32[2,128], index: 9, kind: input, shape index: {}]
  %s10 = inlined_call_operand.vmem [shape: f32[2,128], index: 10, kind: input, shape index: {}]
  %s11 = inlined_call_operand.hbm [shape: f32[2,128,512], index: 11, kind: input, shape index: {}]
  %s12 = inlined_call_operand.vmem [shape: f32[2,512], index: 12, kind: input, shape index: {}]
  %s13 = inlined_call_operand.hbm [shape: f32[2,512,128], index: 13, kind: input, shape index: {}]
  %s14 = inlined_call_operand.vmem [shape: f32[2,128], index: 14, kind: input, shape index: {}]
  %s15 = inlined_call_operand.vmem [shape: f32[2,5,128], index: 15, kind: output, shape index: {}]
  %s16 = sld [smem:[#allocation0]]
  $region109: #{dino_vit_forward.1} parent=0
    _
  %s18 = ssub.s32 1, %s16
  %s19 = scalar_select 0, %s18, %s16
  $region1: #{dino_vit_forward.1} parent=0
    #allocation2 [shape = 'u8[98304]{0}', space=vmem, size = 0x18000, scoped, tag = 'input window, operand 1, single buffered']
    #allocation3 [shape = 's32[2]{0}', space=sflag, size = 0x8, scoped, tag = 'scoped memory for dino_vit_forward.1']
    #allocation4 [shape = 'u8[131072]{0}', space=vmem, size = 0x20000, scoped, tag = 'input window, operand 7, single buffered']
    #allocation5 [shape = 's32[1]{0}', space=sflag, size = 0x4, scoped, tag = 'scoped memory for dino_vit_forward.1']
    #allocation6 [shape = 'u8[524288]{0}', space=vmem, size = 0x80000, scoped, tag = 'input window, operand 11, single buffered']
    #allocation7 [shape = 'u8[524288]{0}', space=vmem, size = 0x80000, scoped, tag = 'input window, operand 13, single buffered']
    #allocation8 [shape = 's32[1]{0}', space=sflag, size = 0x4, scoped, tag = 'scoped memory for dino_vit_forward.1']
    %20 = vsyncpa [#allocation3], 0
    %21 = vsyncpa [#allocation5], 0
    %22 = vsyncpa [#allocation8], 0
    loop: start=0, step=1, limit=4
    $region2: #{dino_vit_forward.1} parent=1 // loop_pre_header
      _
    $region3: #{dino_vit_forward.1} parent=1 // loop_header
      %s24 = sphi 0, %s28
      %p25 = scmp.ge.s32.totalorder %s24, 4
      %s34 = sphi 0, %s36
      %s37 = sphi 0, %s34
      %s38 = sphi 0, %s37
      %s54 = sphi 0, %s38
      %s58 = sphi 0, %s58
      %s60 = sphi 0, %s58
      %s61 = sphi 0, %s60
      %s75 = sphi 0, %s61
      %s81 = sphi 0, %s83
      %s84 = sphi 0, %s81
      %s85 = sphi 0, %s84
      %s101 = sphi 0, %s85
      %s105 = sphi 0, %s105
      %s107 = sphi 0, %s105
      %s108 = sphi 0, %s107
      %s122 = sphi 0, %s108
      %s126 = sphi 0, %s126
      %s128 = sphi 0, %s126
      %s129 = sphi 0, %s128
      %s143 = sphi 0, %s129
      %s147 = sphi 0, %s147
      %s149 = sphi 0, %s147
      %s150 = sphi 0, %s149
      %s164 = sphi 0, %s150
      %s168 = sphi 0, %s168
      %s170 = sphi 0, %s168
      %s171 = sphi 0, %s170
      %s185 = sphi 0, %s171
      %s189 = sphi 0, %s189
      %s191 = sphi 0, %s189
      %s192 = sphi 0, %s191
      %s206 = sphi 0, %s192
      %s210 = sphi 0, %s210
      %s212 = sphi 0, %s210
      %s213 = sphi 0, %s212
      %s227 = sphi 0, %s213
      %s231 = sphi 0, %s231
      %s233 = sphi 0, %s231
      %s234 = sphi 0, %s233
      %s248 = sphi 0, %s234
      %s252 = sphi 0, %s252
      %s254 = sphi 0, %s252
      %s255 = sphi 0, %s254
      %s269 = sphi 0, %s255
      %s273 = sphi 0, %s273
      %s275 = sphi 0, %s273
      %s276 = sphi 0, %s275
      %s290 = sphi 0, %s276
      %s294 = sphi 0, %s294
      %s296 = sphi 0, %s294
      %s297 = sphi 0, %s296
      %s311 = sphi 0, %s297
      %s315 = sphi 0, %s315
      %s317 = sphi 0, %s315
      %s318 = sphi 0, %s317
      %s332 = sphi 0, %s318
      %s336 = sphi 0, %s336
      %s338 = sphi 0, %s336
      %s339 = sphi 0, %s338
      %s353 = sphi 0, %s339
      %s359 = sphi 0, %s361
      %s362 = sphi 0, %s359
      %s363 = sphi 0, %s362
      %s379 = sphi 0, %s363
    $region4: #{dino_vit_forward.1} parent=1 // loop_header_branch
      %27 = sbr.rel (%p25) target = $region8
    $region5: #{dino_vit_forward.1} parent=1 // loop_body
      %s29 = ssub.s32 %s24, 1
      %s30 = ssub.s32 %s24, 2
      %s31 = sadd.s32 %s24, 1
      %s32 = ssub.s32 %s24, %s31
      %p33 = scmp.eq.s32.totalorder %s32, 0
      %s35 = sadd.s32 %s34, 1
      %s36 = scalar_select %p33, %s34, %s35
      %p39 = pneg %p33
      %p40 = scmp.eq.s32.totalorder %s24, 1
      %p41 = por %p39, %p40
      %p42 = scmp.ne.s32.totalorder %s34, %s37
      %p43 = scmp.eq.s32.totalorder %s24, 0
      %p44 = por %p42, %p43
      %p45 = scmp.ne.s32.totalorder %s34, %s37
      %p46 = scmp.eq.s32.totalorder %s29, 1
      %p47 = por %p45, %p46
      %p48 = scmp.ne.s32.totalorder %s37, %s38
      %p49 = scmp.eq.s32.totalorder %s29, 0
      %p50 = por %p48, %p49
      %p51 = scmp.ne.s32.totalorder %s37, %s38
      %p52 = scmp.eq.s32.totalorder %s30, 1
      %p53 = por %p51, %p52
      %p55 = scmp.ne.s32.totalorder %s38, %s54
      %p56 = scmp.eq.s32.totalorder %s30, 0
      %p57 = por %p55, %p56
      %s59 = sadd.s32 %s58, 1
      %p62 = scmp.eq.s32.totalorder %s24, 1
      %p63 = scmp.ne.s32.totalorder %s58, %s60
      %p64 = scmp.eq.s32.totalorder %s24, 0
      %p65 = por %p63, %p64
      %p66 = scmp.ne.s32.totalorder %s58, %s60
      %p67 = scmp.eq.s32.totalorder %s29, 1
      %p68 = por %p66, %p67
      %p69 = scmp.ne.s32.totalorder %s60, %s61
      %p70 = scmp.eq.s32.totalorder %s29, 0
      %p71 = por %p69, %p70
      %p72 = scmp.ne.s32.totalorder %s60, %s61
      %p73 = scmp.eq.s32.totalorder %s30, 1
      %p74 = por %p72, %p73
      %p76 = scmp.ne.s32.totalorder %s61, %s75
      %p77 = scmp.eq.s32.totalorder %s30, 0
      %p78 = por %p76, %p77
      %s79 = ssub.s32 %s24, %s31
      %p80 = scmp.eq.s32.totalorder %s79, 0
      %s82 = sadd.s32 %s81, 1
      %s83 = scalar_select %p80, %s81, %s82
      %p86 = pneg %p80
      %p87 = scmp.eq.s32.totalorder %s24, 1
      %p88 = por %p86, %p87
      %p89 = scmp.ne.s32.totalorder %s81, %s84
      %p90 = scmp.eq.s32.totalorder %s24, 0
      %p91 = por %p89, %p90
      %p92 = scmp.ne.s32.totalorder %s81, %s84
      %p93 = scmp.eq.s32.totalorder %s29, 1
      %p94 = por %p92, %p93
      %p95 = scmp.ne.s32.totalorder %s84, %s85
      %p96 = scmp.eq.s32.totalorder %s29, 0
      %p97 = por %p95, %p96
      %p98 = scmp.ne.s32.totalorder %s84, %s85
      %p99 = scmp.eq.s32.totalorder %s30, 1
      %p100 = por %p98, %p99
      %p102 = scmp.ne.s32.totalorder %s85, %s101
      %p103 = scmp.eq.s32.totalorder %s30, 0
      %p104 = por %p102, %p103
      %s106 = sadd.s32 %s105, 1
      %p109 = scmp.eq.s32.totalorder %s24, 1
      %p110 = scmp.ne.s32.totalorder %s105, %s107
      %p111 = scmp.eq.s32.totalorder %s24, 0
      %p112 = por %p110, %p111
      %p113 = scmp.ne.s32.totalorder %s105, %s107
      %p114 = scmp.eq.s32.totalorder %s29, 1
      %p115 = por %p113, %p114
      %p116 = scmp.ne.s32.totalorder %s107, %s108
      %p117 = scmp.eq.s32.totalorder %s29, 0
      %p118 = por %p116, %p117
      %p119 = scmp.ne.s32.totalorder %s107, %s108
      %p120 = scmp.eq.s32.totalorder %s30, 1
      %p121 = por %p119, %p120
      %p123 = scmp.ne.s32.totalorder %s108, %s122
      %p124 = scmp.eq.s32.totalorder %s30, 0
      %p125 = por %p123, %p124
      %s127 = sadd.s32 %s126, 1
      %p130 = scmp.eq.s32.totalorder %s24, 1
      %p131 = scmp.ne.s32.totalorder %s126, %s128
      %p132 = scmp.eq.s32.totalorder %s24, 0
      %p133 = por %p131, %p132
      %p134 = scmp.ne.s32.totalorder %s126, %s128
      %p135 = scmp.eq.s32.totalorder %s29, 1
      %p136 = por %p134, %p135
      %p137 = scmp.ne.s32.totalorder %s128, %s129
      %p138 = scmp.eq.s32.totalorder %s29, 0
      %p139 = por %p137, %p138
      %p140 = scmp.ne.s32.totalorder %s128, %s129
      %p141 = scmp.eq.s32.totalorder %s30, 1
      %p142 = por %p140, %p141
      %p144 = scmp.ne.s32.totalorder %s129, %s143
      %p145 = scmp.eq.s32.totalorder %s30, 0
      %p146 = por %p144, %p145
      %s148 = sadd.s32 %s147, 1
      %p151 = scmp.eq.s32.totalorder %s24, 1
      %p152 = scmp.ne.s32.totalorder %s147, %s149
      %p153 = scmp.eq.s32.totalorder %s24, 0
      %p154 = por %p152, %p153
      %p155 = scmp.ne.s32.totalorder %s147, %s149
      %p156 = scmp.eq.s32.totalorder %s29, 1
      %p157 = por %p155, %p156
      %p158 = scmp.ne.s32.totalorder %s149, %s150
      %p159 = scmp.eq.s32.totalorder %s29, 0
      %p160 = por %p158, %p159
      %p161 = scmp.ne.s32.totalorder %s149, %s150
      %p162 = scmp.eq.s32.totalorder %s30, 1
      %p163 = por %p161, %p162
      %p165 = scmp.ne.s32.totalorder %s150, %s164
      %p166 = scmp.eq.s32.totalorder %s30, 0
      %p167 = por %p165, %p166
      %s169 = sadd.s32 %s168, 1
      %p172 = scmp.eq.s32.totalorder %s24, 1
      %p173 = scmp.ne.s32.totalorder %s168, %s170
      %p174 = scmp.eq.s32.totalorder %s24, 0
      %p175 = por %p173, %p174
      %p176 = scmp.ne.s32.totalorder %s168, %s170
      %p177 = scmp.eq.s32.totalorder %s29, 1
      %p178 = por %p176, %p177
      %p179 = scmp.ne.s32.totalorder %s170, %s171
      %p180 = scmp.eq.s32.totalorder %s29, 0
      %p181 = por %p179, %p180
      %p182 = scmp.ne.s32.totalorder %s170, %s171
      %p183 = scmp.eq.s32.totalorder %s30, 1
      %p184 = por %p182, %p183
      %p186 = scmp.ne.s32.totalorder %s171, %s185
      %p187 = scmp.eq.s32.totalorder %s30, 0
      %p188 = por %p186, %p187
      %s190 = sadd.s32 %s189, 1
      %p193 = scmp.eq.s32.totalorder %s24, 1
      %p194 = scmp.ne.s32.totalorder %s189, %s191
      %p195 = scmp.eq.s32.totalorder %s24, 0
      %p196 = por %p194, %p195
      %p197 = scmp.ne.s32.totalorder %s189, %s191
      %p198 = scmp.eq.s32.totalorder %s29, 1
      %p199 = por %p197, %p198
      %p200 = scmp.ne.s32.totalorder %s191, %s192
      %p201 = scmp.eq.s32.totalorder %s29, 0
      %p202 = por %p200, %p201
      %p203 = scmp.ne.s32.totalorder %s191, %s192
      %p204 = scmp.eq.s32.totalorder %s30, 1
      %p205 = por %p203, %p204
      %p207 = scmp.ne.s32.totalorder %s192, %s206
      %p208 = scmp.eq.s32.totalorder %s30, 0
      %p209 = por %p207, %p208
      %s211 = sadd.s32 %s210, 1
      %p214 = scmp.eq.s32.totalorder %s24, 1
      %p215 = scmp.ne.s32.totalorder %s210, %s212
      %p216 = scmp.eq.s32.totalorder %s24, 0
      %p217 = por %p215, %p216
      %p218 = scmp.ne.s32.totalorder %s210, %s212
      %p219 = scmp.eq.s32.totalorder %s29, 1
      %p220 = por %p218, %p219
      %p221 = scmp.ne.s32.totalorder %s212, %s213
      %p222 = scmp.eq.s32.totalorder %s29, 0
      %p223 = por %p221, %p222
      %p224 = scmp.ne.s32.totalorder %s212, %s213
      %p225 = scmp.eq.s32.totalorder %s30, 1
      %p226 = por %p224, %p225
      %p228 = scmp.ne.s32.totalorder %s213, %s227
      %p229 = scmp.eq.s32.totalorder %s30, 0
      %p230 = por %p228, %p229
      %s232 = sadd.s32 %s231, 1
      %p235 = scmp.eq.s32.totalorder %s24, 1
      %p236 = scmp.ne.s32.totalorder %s231, %s233
      %p237 = scmp.eq.s32.totalorder %s24, 0
      %p238 = por %p236, %p237
      %p239 = scmp.ne.s32.totalorder %s231, %s233
      %p240 = scmp.eq.s32.totalorder %s29, 1
      %p241 = por %p239, %p240
      %p242 = scmp.ne.s32.totalorder %s233, %s234
      %p243 = scmp.eq.s32.totalorder %s29, 0
      %p244 = por %p242, %p243
      %p245 = scmp.ne.s32.totalorder %s233, %s234
      %p246 = scmp.eq.s32.totalorder %s30, 1
      %p247 = por %p245, %p246
      %p249 = scmp.ne.s32.totalorder %s234, %s248
      %p250 = scmp.eq.s32.totalorder %s30, 0
      %p251 = por %p249, %p250
      %s253 = sadd.s32 %s252, 1
      %p256 = scmp.eq.s32.totalorder %s24, 1
      %p257 = scmp.ne.s32.totalorder %s252, %s254
      %p258 = scmp.eq.s32.totalorder %s24, 0
      %p259 = por %p257, %p258
      %p260 = scmp.ne.s32.totalorder %s252, %s254
      %p261 = scmp.eq.s32.totalorder %s29, 1
      %p262 = por %p260, %p261
      %p263 = scmp.ne.s32.totalorder %s254, %s255
      %p264 = scmp.eq.s32.totalorder %s29, 0
      %p265 = por %p263, %p264
      %p266 = scmp.ne.s32.totalorder %s254, %s255
      %p267 = scmp.eq.s32.totalorder %s30, 1
      %p268 = por %p266, %p267
      %p270 = scmp.ne.s32.totalorder %s255, %s269
      %p271 = scmp.eq.s32.totalorder %s30, 0
      %p272 = por %p270, %p271
      %s274 = sadd.s32 %s273, 1
      %p277 = scmp.eq.s32.totalorder %s24, 1
      %p278 = scmp.ne.s32.totalorder %s273, %s275
      %p279 = scmp.eq.s32.totalorder %s24, 0
      %p280 = por %p278, %p279
      %p281 = scmp.ne.s32.totalorder %s273, %s275
      %p282 = scmp.eq.s32.totalorder %s29, 1
      %p283 = por %p281, %p282
      %p284 = scmp.ne.s32.totalorder %s275, %s276
      %p285 = scmp.eq.s32.totalorder %s29, 0
      %p286 = por %p284, %p285
      %p287 = scmp.ne.s32.totalorder %s275, %s276
      %p288 = scmp.eq.s32.totalorder %s30, 1
      %p289 = por %p287, %p288
      %p291 = scmp.ne.s32.totalorder %s276, %s290
      %p292 = scmp.eq.s32.totalorder %s30, 0
      %p293 = por %p291, %p292
      %s295 = sadd.s32 %s294, 1
      %p298 = scmp.eq.s32.totalorder %s24, 1
      %p299 = scmp.ne.s32.totalorder %s294, %s296
      %p300 = scmp.eq.s32.totalorder %s24, 0
      %p301 = por %p299, %p300
      %p302 = scmp.ne.s32.totalorder %s294, %s296
      %p303 = scmp.eq.s32.totalorder %s29, 1
      %p304 = por %p302, %p303
      %p305 = scmp.ne.s32.totalorder %s296, %s297
      %p306 = scmp.eq.s32.totalorder %s29, 0
      %p307 = por %p305, %p306
      %p308 = scmp.ne.s32.totalorder %s296, %s297
      %p309 = scmp.eq.s32.totalorder %s30, 1
      %p310 = por %p308, %p309
      %p312 = scmp.ne.s32.totalorder %s297, %s311
      %p313 = scmp.eq.s32.totalorder %s30, 0
      %p314 = por %p312, %p313
      %s316 = sadd.s32 %s315, 1
      %p319 = scmp.eq.s32.totalorder %s24, 1
      %p320 = scmp.ne.s32.totalorder %s315, %s317
      %p321 = scmp.eq.s32.totalorder %s24, 0
      %p322 = por %p320, %p321
      %p323 = scmp.ne.s32.totalorder %s315, %s317
      %p324 = scmp.eq.s32.totalorder %s29, 1
      %p325 = por %p323, %p324
      %p326 = scmp.ne.s32.totalorder %s317, %s318
      %p327 = scmp.eq.s32.totalorder %s29, 0
      %p328 = por %p326, %p327
      %p329 = scmp.ne.s32.totalorder %s317, %s318
      %p330 = scmp.eq.s32.totalorder %s30, 1
      %p331 = por %p329, %p330
      %p333 = scmp.ne.s32.totalorder %s318, %s332
      %p334 = scmp.eq.s32.totalorder %s30, 0
      %p335 = por %p333, %p334
      %s337 = sadd.s32 %s336, 1
      %p340 = scmp.eq.s32.totalorder %s24, 1
      %p341 = scmp.ne.s32.totalorder %s336, %s338
      %p342 = scmp.eq.s32.totalorder %s24, 0
      %p343 = por %p341, %p342
      %p344 = scmp.ne.s32.totalorder %s336, %s338
      %p345 = scmp.eq.s32.totalorder %s29, 1
      %p346 = por %p344, %p345
      %p347 = scmp.ne.s32.totalorder %s338, %s339
      %p348 = scmp.eq.s32.totalorder %s29, 0
      %p349 = por %p347, %p348
      %p350 = scmp.ne.s32.totalorder %s338, %s339
      %p351 = scmp.eq.s32.totalorder %s30, 1
      %p352 = por %p350, %p351
      %p354 = scmp.ne.s32.totalorder %s339, %s353
      %p355 = scmp.eq.s32.totalorder %s30, 0
      %p356 = por %p354, %p355
      %s357 = ssub.s32 %s24, %s31
      %p358 = scmp.eq.s32.totalorder %s357, 0
      %s360 = sadd.s32 %s359, 1
      %s361 = scalar_select %p358, %s359, %s360
      %p364 = pneg %p358
      %p365 = scmp.eq.s32.totalorder %s24, 1
      %p366 = por %p364, %p365
      %p367 = scmp.ne.s32.totalorder %s359, %s362
      %p368 = scmp.eq.s32.totalorder %s24, 0
      %p369 = por %p367, %p368
      %p370 = scmp.ne.s32.totalorder %s359, %s362
      %p371 = scmp.eq.s32.totalorder %s29, 1
      %p372 = por %p370, %p371
      %p373 = scmp.ne.s32.totalorder %s362, %s363
      %p374 = scmp.eq.s32.totalorder %s29, 0
      %p375 = por %p373, %p374
      %p376 = scmp.ne.s32.totalorder %s362, %s363
      %p377 = scmp.eq.s32.totalorder %s30, 1
      %p378 = por %p376, %p377
      %p380 = scmp.ne.s32.totalorder %s363, %s379
      %p381 = scmp.eq.s32.totalorder %s30, 0
      %p382 = por %p380, %p381
      %p383 = scmp.le.s32.totalorder 1, %s24
      %p384 = scmp.lt.s32.totalorder %s24, 3
      %p385 = pnand %p383, %p384
      %p386 = pneg %p385
      // Predicated region
      $region9: #{dino_vit_forward.1} parent=5 // pred_check
        _
      $region10: #{dino_vit_forward.1} parent=5 // pred_check_branch
        %388 = sbr.rel (%p385) target = $region12
      $region11: #{dino_vit_forward.1} parent=5 // pred_region
        %s389 = ssub.s32 %s24, 1
        // Predicated region
        $region13: #{dino_vit_forward.1} parent=11 // pred_check
          %p390 = pneg %p71
        $region14: #{dino_vit_forward.1} parent=11 // pred_check_branch
          %392 = sbr.rel (%p390) target = $region16
        $region15: #{dino_vit_forward.1} parent=11 // pred_region
          %394 = vsyncadd [#allocation3], 0
          %s395 = sshll.u32 %s1, 4
          %s396 = int_to_ptr.hbm [resolvable:$true] %s395
          %s397 = sshll.u32 [#allocation2], 4
          %s398 = int_to_ptr.vmem [resolvable:$true] %s397
          %403 = dma.hbm_to_vmem [thread:$0]  %s396, 3072, %s398, [#allocation3], 128, 128, 8
        $region16: #{dino_vit_forward.1} parent=11 // pred_fallthru
          _
        // Predicated region
        $region17: #{dino_vit_forward.1} parent=11 // pred_check
          %p404 = pneg %p118
        $region18: #{dino_vit_forward.1} parent=11 // pred_check_branch
          %406 = sbr.rel (%p404) target = $region20
        $region19: #{dino_vit_forward.1} parent=11 // pred_region
          _
        $region20: #{dino_vit_forward.1} parent=11 // pred_fallthru
          _
        // Predicated region
        $region21: #{dino_vit_forward.1} parent=11 // pred_check
          %p407 = pneg %p139
        $region22: #{dino_vit_forward.1} parent=11 // pred_check_branch
          %409 = sbr.rel (%p407) target = $region24
        $region23: #{dino_vit_forward.1} parent=11 // pred_region
          _
        $region24: #{dino_vit_forward.1} parent=11 // pred_fallthru
          _
        // Predicated region
        $region25: #{dino_vit_forward.1} parent=11 // pred_check
          %p410 = pneg %p160
        $region26: #{dino_vit_forward.1} parent=11 // pred_check_branch
          %412 = sbr.rel (%p410) target = $region28
        $region27: #{dino_vit_forward.1} parent=11 // pred_region
          _
        $region28: #{dino_vit_forward.1} parent=11 // pred_fallthru
          _
        // Predicated region
        $region29: #{dino_vit_forward.1} parent=11 // pred_check
          %p413 = pneg %p181
        $region30: #{dino_vit_forward.1} parent=11 // pred_check_branch
          %415 = sbr.rel (%p413) target = $region32
        $region31: #{dino_vit_forward.1} parent=11 // pred_region
          _
        $region32: #{dino_vit_forward.1} parent=11 // pred_fallthru
          _
        // Predicated region
        $region33: #{dino_vit_forward.1} parent=11 // pred_check
          %p416 = pneg %p202
        $region34: #{dino_vit_forward.1} parent=11 // pred_check_branch
          %418 = sbr.rel (%p416) target = $region36
        $region35: #{dino_vit_forward.1} parent=11 // pred_region
          %420 = vsyncadd [#allocation5], 0
          %s421 = sshll.u32 %s7, 4
          %s422 = int_to_ptr.hbm [resolvable:$true] %s421
          %s423 = sshll.u32 [#allocation4], 4
          %s424 = int_to_ptr.vmem [resolvable:$true] %s423
          %429 = dma.hbm_to_vmem [thread:$0]  %s422, 4096, %s424, [#allocation5], 128, 128, 8
        $region36: #{dino_vit_forward.1} parent=11 // pred_fallthru
          _
        // Predicated region
        $region37: #{dino_vit_forward.1} parent=11 // pred_check
          %p430 = pneg %p223
        $region38: #{dino_vit_forward.1} parent=11 // pred_check_branch
          %432 = sbr.rel (%p430) target = $region40
        $region39: #{dino_vit_forward.1} parent=11 // pred_region
          _
        $region40: #{dino_vit_forward.1} parent=11 // pred_fallthru
          _
        // Predicated region
        $region41: #{dino_vit_forward.1} parent=11 // pred_check
          %p433 = pneg %p244
        $region42: #{dino_vit_forward.1} parent=11 // pred_check_branch
          %435 = sbr.rel (%p433) target = $region44
        $region43: #{dino_vit_forward.1} parent=11 // pred_region
          _
        $region44: #{dino_vit_forward.1} parent=11 // pred_fallthru
          _
        // Predicated region
        $region45: #{dino_vit_forward.1} parent=11 // pred_check
          %p436 = pneg %p265
        $region46: #{dino_vit_forward.1} parent=11 // pred_check_branch
          %438 = sbr.rel (%p436) target = $region48
        $region47: #{dino_vit_forward.1} parent=11 // pred_region
          _
        $region48: #{dino_vit_forward.1} parent=11 // pred_fallthru
          _
        // Predicated region
        $region49: #{dino_vit_forward.1} parent=11 // pred_check
          %p439 = pneg %p286
        $region50: #{dino_vit_forward.1} parent=11 // pred_check_branch
          %441 = sbr.rel (%p439) target = $region52
        $region51: #{dino_vit_forward.1} parent=11 // pred_region
          %443 = vsyncadd [#allocation5], 0
          %s444 = sshll.u32 %s11, 4
          %s445 = int_to_ptr.hbm [resolvable:$true] %s444
          %s446 = sshll.u32 [#allocation6], 4
          %s447 = int_to_ptr.vmem [resolvable:$true] %s446
          %452 = dma.hbm_to_vmem [thread:$0]  %s445, 16384, %s447, [#allocation5], 512, 512, 32
        $region52: #{dino_vit_forward.1} parent=11 // pred_fallthru
          _
        // Predicated region
        $region53: #{dino_vit_forward.1} parent=11 // pred_check
          %p453 = pneg %p307
        $region54: #{dino_vit_forward.1} parent=11 // pred_check_branch
          %455 = sbr.rel (%p453) target = $region56
        $region55: #{dino_vit_forward.1} parent=11 // pred_region
          _
        $region56: #{dino_vit_forward.1} parent=11 // pred_fallthru
          _
        // Predicated region
        $region57: #{dino_vit_forward.1} parent=11 // pred_check
          %p456 = pneg %p328
        $region58: #{dino_vit_forward.1} parent=11 // pred_check_branch
          %458 = sbr.rel (%p456) target = $region60
        $region59: #{dino_vit_forward.1} parent=11 // pred_region
          %460 = vsyncadd [#allocation8], 0
          %s461 = sshll.u32 %s13, 4
          %s462 = int_to_ptr.hbm [resolvable:$true] %s461
          %s463 = sshll.u32 [#allocation7], 4
          %s464 = int_to_ptr.vmem [resolvable:$true] %s463
          %469 = dma.hbm_to_vmem [thread:$0]  %s462, 16384, %s464, [#allocation8], 128, 128, 8
        $region60: #{dino_vit_forward.1} parent=11 // pred_fallthru
          _
        // Predicated region
        $region61: #{dino_vit_forward.1} parent=11 // pred_check
          %p470 = pneg %p349
        $region62: #{dino_vit_forward.1} parent=11 // pred_check_branch
          %472 = sbr.rel (%p470) target = $region64
        $region63: #{dino_vit_forward.1} parent=11 // pred_region
          _
        $region64: #{dino_vit_forward.1} parent=11 // pred_fallthru
          _
      $region12: #{dino_vit_forward.1} parent=5 // pred_fallthru
        _
      %p473 = scmp.lt.s32.totalorder %s24, 2
      // Predicated region
      $region65: #{dino_vit_forward.1} parent=5 // pred_check
        %p474 = pneg %p473
      $region66: #{dino_vit_forward.1} parent=5 // pred_check_branch
        %476 = sbr.rel (%p474) target = $region68
      $region67: #{dino_vit_forward.1} parent=5 // pred_region
        // Predicated region
        $region69: #{dino_vit_forward.1} parent=67 // pred_check
          %p477 = pneg %p44
        $region70: #{dino_vit_forward.1} parent=67 // pred_check_branch
          %479 = sbr.rel (%p477) target = $region72
        $region71: #{dino_vit_forward.1} parent=67 // pred_region
          %p480 = scmp.lt.s32.totalorder %s24, 1
          %s481 = scalar_select %p480, %s24, 1
          %s482 = smul.addr %s481, 2
          %s483 = smul.addr %s482, 8
          %s484 = scalar_lea.vmem %s0, %s483
        $region72: #{dino_vit_forward.1} parent=67 // pred_fallthru
          _
        // Predicated region
        $region73: #{dino_vit_forward.1} parent=67 // pred_check
          %p485 = pneg %p91
        $region74: #{dino_vit_forward.1} parent=67 // pred_check_branch
          %487 = sbr.rel (%p485) target = $region76
        $region75: #{dino_vit_forward.1} parent=67 // pred_region
          %p488 = scmp.lt.s32.totalorder %s24, 1
          %s489 = scalar_select %p488, %s24, 1
          %s490 = smul.addr %s489, 8
          %s491 = scalar_lea.vmem %s2, %s490
        $region76: #{dino_vit_forward.1} parent=67 // pred_fallthru
          _
      $region68: #{dino_vit_forward.1} parent=5 // pred_fallthru
        _
      %p492 = scmp.le.s32.totalorder 1, %s24
      %p493 = scmp.lt.s32.totalorder %s24, 3
      %p494 = pnand %p492, %p493
      %p495 = pneg %p494
      // Predicated region
      $region77: #{dino_vit_forward.1} parent=5 // pred_check
        _
      $region78: #{dino_vit_forward.1} parent=5 // pred_check_branch
        %497 = sbr.rel (%p494) target = $region80
      $region79: #{dino_vit_forward.1} parent=5 // pred_region
        %s498 = ssub.s32 %s24, 1
        // Predicated region
        $region81: #{dino_vit_forward.1} parent=79 // pred_check
          %p499 = pneg %p71
        $region82: #{dino_vit_forward.1} parent=79 // pred_check_branch
          %501 = sbr.rel (%p499) target = $region84
        $region83: #{dino_vit_forward.1} parent=79 // pred_region
          %503 = dma.done [#allocation3], 3072
        $region84: #{dino_vit_forward.1} parent=79 // pred_fallthru
          _
        // Predicated region
        $region85: #{dino_vit_forward.1} parent=79 // pred_check
          %p504 = pneg %p202
        $region86: #{dino_vit_forward.1} parent=79 // pred_check_branch
          %506 = sbr.rel (%p504) target = $region88
        $region87: #{dino_vit_forward.1} parent=79 // pred_region
          %508 = dma.done [#allocation5], 4096
        $region88: #{dino_vit_forward.1} parent=79 // pred_fallthru
          _
        // Predicated region
        $region89: #{dino_vit_forward.1} parent=79 // pred_check
          %p509 = pneg %p286
        $region90: #{dino_vit_forward.1} parent=79 // pred_check_branch
          %511 = sbr.rel (%p509) target = $region92
        $region91: #{dino_vit_forward.1} parent=79 // pred_region
          %513 = dma.done [#allocation5], 16384
        $region92: #{dino_vit_forward.1} parent=79 // pred_fallthru
          _
        // Predicated region
        $region93: #{dino_vit_forward.1} parent=79 // pred_check
          %p514 = pneg %p328
        $region94: #{dino_vit_forward.1} parent=79 // pred_check_branch
          %516 = sbr.rel (%p514) target = $region96
        $region95: #{dino_vit_forward.1} parent=79 // pred_region
          %518 = dma.done [#allocation8], 16384
        $region96: #{dino_vit_forward.1} parent=79 // pred_fallthru
          _
        %p519 = scmp.lt.s32.totalorder %s29, 1
        %s520 = scalar_select %p519, %s29, 1
        %s521 = smul.addr %s520, 2
        %s522 = smul.addr %s521, 8
        %s523 = scalar_lea.vmem %s0, %s522
        %p524 = pneg %p50
        %p525 = pneg %p47
        %p526 = pneg %p71
        %p527 = pneg %p68
        %p528 = scmp.lt.s32.totalorder %s29, 1
        %s529 = scalar_select %p528, %s29, 1
        %s530 = smul.addr %s529, 8
        %s531 = scalar_lea.vmem %s2, %s530
        %p532 = pneg %p97
        %p533 = pneg %p94
        %p534 = pneg %p118
        %p535 = pneg %p115
        %p536 = pneg %p139
        %p537 = pneg %p136
        %p538 = pneg %p160
        %p539 = pneg %p157
        %p540 = pneg %p181
        %p541 = pneg %p178
        %p542 = pneg %p202
        %p543 = pneg %p199
        %p544 = pneg %p223
        %p545 = pneg %p220
        %p546 = pneg %p244
        %p547 = pneg %p241
        %p548 = pneg %p265
        %p549 = pneg %p262
        %p550 = pneg %p286
        %p551 = pneg %p283
        %p552 = pneg %p307
        %p553 = pneg %p304
        %p554 = pneg %p328
        %p555 = pneg %p325
        %p556 = pneg %p349
        %p557 = pneg %p346
        %p558 = pneg %p375
        %p559 = pneg %p372
        %p560 = scmp.lt.s32.totalorder %s29, 1
        %s561 = scalar_select %p560, %s29, 1
        %s562 = smul.addr %s561, 8
        %s563 = scalar_lea.vmem %s15, %s562
        %p564 = scmp.lt.s32.totalorder %s29, 1
        %s565 = scalar_select %p564, %s29, 1
        %s566 = smul.addr %s565, 2
        %s567 = smul.addr %s566, 8
        %s568 = scalar_lea.vmem %s0, %s567
        %p569 = scmp.lt.s32.totalorder %s29, 1
        %s570 = scalar_select %p569, %s29, 1
        %s571 = smul.addr %s570, 8
        %s572 = scalar_lea.vmem %s2, %s571
        %p573 = scmp.lt.s32.totalorder %s29, 1
        %s574 = scalar_select %p573, %s29, 1
        %s575 = smul.addr %s574, 8
        %s576 = scalar_lea.vmem %s15, %s575
        %v577 = vld [vmem:[%s568] sm:$0x1f]
        %v578 = vld [vmem:[%s568 + $0x8] sm:$0x1f]
        %v579 = vld [vmem:[#allocation2] sm:$0xff]
        %v580 = vld [vmem:[#allocation2 + $0x8] sm:$0xff]
        %v581 = vld [vmem:[#allocation2 + $0x10] sm:$0xff]
        %v582 = vld [vmem:[#allocation2 + $0x18] sm:$0xff]
        %v583 = vld [vmem:[#allocation2 + $0x20] sm:$0xff]
        %v584 = vld [vmem:[#allocation2 + $0x28] sm:$0xff]
        %v585 = vld [vmem:[#allocation2 + $0x30] sm:$0xff]
        %v586 = vld [vmem:[#allocation2 + $0x38] sm:$0xff]
        %v587 = vld [vmem:[#allocation2 + $0x40] sm:$0xff]
        %v588 = vld [vmem:[#allocation2 + $0x48] sm:$0xff]
        %v589 = vld [vmem:[#allocation2 + $0x50] sm:$0xff]
        %v590 = vld [vmem:[#allocation2 + $0x58] sm:$0xff]
        %v591 = vld [vmem:[#allocation2 + $0x60] sm:$0xff]
        %v592 = vld [vmem:[#allocation2 + $0x68] sm:$0xff]
        %v593 = vld [vmem:[#allocation2 + $0x70] sm:$0xff]
        %v594 = vld [vmem:[#allocation2 + $0x78] sm:$0xff]
        %v595 = vld [vmem:[#allocation2 + $0x80] sm:$0xff]
        %v596 = vld [vmem:[#allocation2 + $0x88] sm:$0xff]
        %v597 = vld [vmem:[#allocation2 + $0x90] sm:$0xff]
        %v598 = vld [vmem:[#allocation2 + $0x98] sm:$0xff]
        %v599 = vld [vmem:[#allocation2 + $0xa0] sm:$0xff]
        %v600 = vld [vmem:[#allocation2 + $0xa8] sm:$0xff]
        %v601 = vld [vmem:[#allocation2 + $0xb0] sm:$0xff]
        %v602 = vld [vmem:[#allocation2 + $0xb8] sm:$0xff]
        %v603 = vld [vmem:[%s572] sm:$0x1f]
        %vm604 = vcmask 523264
        %v606 = vsel %vm604, %v578, 0
        %608 = vmatpush.msra.mxu0 %v594
        %609 = vmatpush.msra.mxu0 %v593
        %610 = vmatpush.msra.mxu0 %v592
        %611 = vmatpush.msra.mxu0 %v591
        %612 = vmatpush.msra.mxu0 %v590
        %613 = vmatpush.msra.mxu0 %v589
        %614 = vmatpush.msra.mxu0 %v588
        %615 = vmatpush.msra.mxu0 %v587
        %616 = vmatpush.msra.mxu0 %v586
        %617 = vmatpush.msra.mxu0 %v585
        %618 = vmatpush.msra.mxu0 %v584
        %619 = vmatpush.msra.mxu0 %v583
        %620 = vmatpush.msra.mxu0 %v582
        %621 = vmatpush.msra.mxu0 %v581
        %622 = vmatpush.msra.mxu0 %v580
        %623 = vmatpush.msra.mxu0 %v579
        %624 = vmatmul.f32.gmra.mxu0 %v577
        %v625 = vpop.f32.mrf.mxu0
        %v626 = vadd.f32 %v603, %v625
        %627 = vdwg.mxu0
        %628 = vmatpush.msra.mxu0 0.0
        %629 = vmatpush.msra.mxu0 0.0
        %630 = vmatpush.msra.mxu0 0.0
        %631 = vmatpush.msra.mxu0 0.0
        %632 = vmatpush.msra.mxu0 0.0
        %633 = vmatpush.msra.mxu0 0.0
        %634 = vmatpush.msra.mxu0 0.0
        %635 = vmatpush.msra.mxu0 0.0
        %636 = vmatpush.msra.mxu0 %v602
        %637 = vmatpush.msra.mxu0 %v601
        %638 = vmatpush.msra.mxu0 %v600
        %639 = vmatpush.msra.mxu0 %v599
        %640 = vmatpush.msra.mxu0 %v598
        %641 = vmatpush.msra.mxu0 %v597
        %642 = vmatpush.msra.mxu0 %v596
        %643 = vmatpush.msra.mxu0 %v595
        %644 = vmatmul.f32.gmra.mxu0 %v606
        %v645 = vpop.f32.mrf.mxu0
        %v646 = vadd.f32 %v626, %v645
        %647 = vdwg.mxu0
        %v648 = vld [vmem:[%s3] sm:$0x1]
        %v649 = vld [vmem:[%s4] sm:$0x1]
        %vm650 = vcmask 1044480
        %v651 = vsel %vm650, %v646, 0.0
        %652 = vadd.xlane.f32.xlu0 %v651
        %v653 = vpop.xlane.xlu0 %652
        %v654 = vrcp.pop 128.0
        %v655 = vmul.f32 128.0, %v654
        %v656 = vsub.f32 1.0, %v655
        %v657 = vmul.f32 %v654, %v656
        %v658 = vadd.f32 %v654, %v657
        %vm659 = vweird.f32 %v654
        %v660 = vsel %vm659, %v654, %v658
        %v661 = vmul.f32 %v653, %v660
        %v662 = vsub.f32 %v646, %v661
        %v663 = vmul.f32 %v662, %v662
        %v664 = vsel %vm650, %v663, 0.0
        %665 = vadd.xlane.f32.xlu0 %v664
        %v666 = vpop.xlane.xlu0 %665
        %v667 = vmul.f32 %v666, %v660
        %v668 = vadd.f32 %v667, 1e-06
        %v669 = vrsqrt.pop %v668
        %v670 = vmul.f32 %v669, %v668
        %v671 = vmul.f32 %v670, %v669
        %v672 = vmul.f32 0.5, %v671
        %v673 = vsub.f32 1.5, %v672
        %v674 = vmul.f32 %v669, %v673
        %vm675 = vweird.f32 %v668
        %vm676 = vweird.f32 %v669
        %vm677 = vmor %vm675, %vm676
        %v678 = vsel %vm677, %v669, %v674
        %v679 = vmul.f32 %v662, %v678
        %v680 = vperm.slane %v648, 0
        %v681 = vmul.f32 %v679, %v680
        %v682 = vperm.slane %v649, 0
        %v683 = vadd.f32 %v681, %v682
        %v684 = vld [vmem:[%s5] sm:$0xff]
        %v685 = vld [vmem:[%s5 + $0x8] sm:$0xff]
        %v686 = vld [vmem:[%s5 + $0x10] sm:$0xff]
        %v687 = vld [vmem:[%s5 + $0x18] sm:$0xff]
        %v688 = vld [vmem:[%s5 + $0x20] sm:$0xff]
        %v689 = vld [vmem:[%s5 + $0x28] sm:$0xff]
        %v690 = vld [vmem:[%s5 + $0x30] sm:$0xff]
        %v691 = vld [vmem:[%s5 + $0x38] sm:$0xff]
        %v692 = vld [vmem:[%s5 + $0x40] sm:$0xff]
        %v693 = vld [vmem:[%s5 + $0x48] sm:$0xff]
        %v694 = vld [vmem:[%s5 + $0x50] sm:$0xff]
        %v695 = vld [vmem:[%s5 + $0x58] sm:$0xff]
        %v696 = vld [vmem:[%s5 + $0x60] sm:$0xff]
        %v697 = vld [vmem:[%s5 + $0x68] sm:$0xff]
        %v698 = vld [vmem:[%s5 + $0x70] sm:$0xff]
        %v699 = vld [vmem:[%s5 + $0x78] sm:$0xff]
        %v700 = vld [vmem:[%s5 + $0x80] sm:$0xff]
        %v701 = vld [vmem:[%s5 + $0x88] sm:$0xff]
        %v702 = vld [vmem:[%s5 + $0x90] sm:$0xff]
        %v703 = vld [vmem:[%s5 + $0x98] sm:$0xff]
        %v704 = vld [vmem:[%s5 + $0xa0] sm:$0xff]
        %v705 = vld [vmem:[%s5 + $0xa8] sm:$0xff]
        %v706 = vld [vmem:[%s5 + $0xb0] sm:$0xff]
        %v707 = vld [vmem:[%s5 + $0xb8] sm:$0xff]
        %v708 = vld [vmem:[%s5 + $0xc0] sm:$0xff]
        %v709 = vld [vmem:[%s5 + $0xc8] sm:$0xff]
        %v710 = vld [vmem:[%s5 + $0xd0] sm:$0xff]
        %v711 = vld [vmem:[%s5 + $0xd8] sm:$0xff]
        %v712 = vld [vmem:[%s5 + $0xe0] sm:$0xff]
        %v713 = vld [vmem:[%s5 + $0xe8] sm:$0xff]
        %v714 = vld [vmem:[%s5 + $0xf0] sm:$0xff]
        %v715 = vld [vmem:[%s5 + $0xf8] sm:$0xff]
        %v716 = vld [vmem:[%s5 + $0x100] sm:$0xff]
        %v717 = vld [vmem:[%s5 + $0x108] sm:$0xff]
        %v718 = vld [vmem:[%s5 + $0x110] sm:$0xff]
        %v719 = vld [vmem:[%s5 + $0x118] sm:$0xff]
        %v720 = vld [vmem:[%s5 + $0x120] sm:$0xff]
        %v721 = vld [vmem:[%s5 + $0x128] sm:$0xff]
        %v722 = vld [vmem:[%s5 + $0x130] sm:$0xff]
        %v723 = vld [vmem:[%s5 + $0x138] sm:$0xff]
        %v724 = vld [vmem:[%s5 + $0x140] sm:$0xff]
        %v725 = vld [vmem:[%s5 + $0x148] sm:$0xff]
        %v726 = vld [vmem:[%s5 + $0x150] sm:$0xff]
        %v727 = vld [vmem:[%s5 + $0x158] sm:$0xff]
        %v728 = vld [vmem:[%s5 + $0x160] sm:$0xff]
        %v729 = vld [vmem:[%s5 + $0x168] sm:$0xff]
        %v730 = vld [vmem:[%s5 + $0x170] sm:$0xff]
        %v731 = vld [vmem:[%s5 + $0x178] sm:$0xff]
        %v732 = vld [vmem:[%s6] ss:$2 sm:$0x7]
        %v734 = vperm.slane %v732, 0
        %v735 = vperm.slane %v732, 1
        %v736 = vperm.slane %v732, 2
        %740 = vmatpush.msra.mxu0 %v729
        %741 = vmatpush.msra.mxu0 %v726
        %742 = vmatpush.msra.mxu0 %v723
        %743 = vmatpush.msra.mxu0 %v720
        %744 = vmatpush.msra.mxu0 %v717
        %745 = vmatpush.msra.mxu0 %v714
        %746 = vmatpush.msra.mxu0 %v711
        %747 = vmatpush.msra.mxu0 %v708
        %748 = vmatpush.msra.mxu0 %v705
        %749 = vmatpush.msra.mxu0 %v702
        %750 = vmatpush.msra.mxu0 %v699
        %751 = vmatpush.msra.mxu0 %v696
        %752 = vmatpush.msra.mxu0 %v693
        %753 = vmatpush.msra.mxu0 %v690
        %754 = vmatpush.msra.mxu0 %v687
        %755 = vmatpush.msra.mxu0 %v684
        %756 = vmatmul.f32.gmra.mxu0 %v683
        %v757 = vpop.f32.mrf.mxu0
        %v758 = vadd.f32 %v734, %v757
        %759 = vdwg.mxu0
        %760 = vmatpush.msra.mxu0 %v730
        %761 = vmatpush.msra.mxu0 %v727
        %762 = vmatpush.msra.mxu0 %v724
        %763 = vmatpush.msra.mxu0 %v721
        %764 = vmatpush.msra.mxu0 %v718
        %765 = vmatpush.msra.mxu0 %v715
        %766 = vmatpush.msra.mxu0 %v712
        %767 = vmatpush.msra.mxu0 %v709
        %768 = vmatpush.msra.mxu0 %v706
        %769 = vmatpush.msra.mxu0 %v703
        %770 = vmatpush.msra.mxu0 %v700
        %771 = vmatpush.msra.mxu0 %v697
        %772 = vmatpush.msra.mxu0 %v694
        %773 = vmatpush.msra.mxu0 %v691
        %774 = vmatpush.msra.mxu0 %v688
        %775 = vmatpush.msra.mxu0 %v685
        %776 = vmatmul.f32.gmra.mxu0 %v683
        %v777 = vpop.f32.mrf.mxu0
        %v778 = vadd.f32 %v735, %v777
        %779 = vdwg.mxu0
        %780 = vmatpush.msra.mxu0 %v731
        %781 = vmatpush.msra.mxu0 %v728
        %782 = vmatpush.msra.mxu0 %v725
        %783 = vmatpush.msra.mxu0 %v722
        %784 = vmatpush.msra.mxu0 %v719
        %785 = vmatpush.msra.mxu0 %v716
        %786 = vmatpush.msra.mxu0 %v713
        %787 = vmatpush.msra.mxu0 %v710
        %788 = vmatpush.msra.mxu0 %v707
        %789 = vmatpush.msra.mxu0 %v704
        %790 = vmatpush.msra.mxu0 %v701
        %791 = vmatpush.msra.mxu0 %v698
        %792 = vmatpush.msra.mxu0 %v695
        %793 = vmatpush.msra.mxu0 %v692
        %794 = vmatpush.msra.mxu0 %v689
        %795 = vmatpush.msra.mxu0 %v686
        %796 = vmatmul.f32.gmra.mxu0 %v683
        %v797 = vpop.f32.mrf.mxu0
        %v798 = vadd.f32 %v736, %v797
        %799 = vdwg.mxu0
        %v800 = vmul.f32 %v758, 0.17677669
        %v801 = vld [vmem:[#allocation4] sm:$0xff]
        %v802 = vld [vmem:[#allocation4 + $0x8] sm:$0xff]
        %v803 = vld [vmem:[#allocation4 + $0x10] sm:$0xff]
        %v804 = vld [vmem:[#allocation4 + $0x18] sm:$0xff]
        %v805 = vld [vmem:[#allocation4 + $0x20] sm:$0xff]
        %v806 = vld [vmem:[#allocation4 + $0x28] sm:$0xff]
        %v807 = vld [vmem:[#allocation4 + $0x30] sm:$0xff]
        %v808 = vld [vmem:[#allocation4 + $0x38] sm:$0xff]
        %v809 = vld [vmem:[#allocation4 + $0x40] sm:$0xff]
        %v810 = vld [vmem:[#allocation4 + $0x48] sm:$0xff]
        %v811 = vld [vmem:[#allocation4 + $0x50] sm:$0xff]
        %v812 = vld [vmem:[#allocation4 + $0x58] sm:$0xff]
        %v813 = vld [vmem:[#allocation4 + $0x60] sm:$0xff]
        %v814 = vld [vmem:[#allocation4 + $0x68] sm:$0xff]
        %v815 = vld [vmem:[#allocation4 + $0x70] sm:$0xff]
        %v816 = vld [vmem:[#allocation4 + $0x78] sm:$0xff]
        %vm817 = vcmask 261120
        %v819 = vsel %vm817, %v800, 0
        %v822 = vsel %vm817, %v778, 0
        %824 = vmatpush.xpose.msra.mxu0 0.0
        %825 = vmatpush.xpose.msra.mxu0 0.0
        %826 = vmatpush.xpose.msra.mxu0 0.0
        %827 = vmatpush.xpose.msra.mxu0 0.0
        %828 = vmatpush.xpose.msra.mxu0 0.0
        %829 = vmatpush.xpose.msra.mxu0 0.0
        %830 = vmatpush.xpose.msra.mxu0 0.0
        %831 = vmatpush.xpose.msra.mxu0 0.0
        %832 = vmatpush.xpose.msra.mxu0 0.0
        %833 = vmatpush.xpose.msra.mxu0 0.0
        %834 = vmatpush.xpose.msra.mxu0 0.0
        %835 = vmatpush.xpose.msra.mxu0 0.0
        %836 = vmatpush.xpose.msra.mxu0 0.0
        %837 = vmatpush.xpose.msra.mxu0 0.0
        %838 = vmatpush.xpose.msra.mxu0 0.0
        %839 = vmatpush.xpose.msra.mxu0 %v822
        %840 = vmatmul.f32.gmra.mxu0 %v819
        %v841 = vpop.f32.mrf.mxu0
        %v842 = vadd.f32 0.0, %v841
        %843 = vdwg.mxu0
        %vm844 = vcmask 36864
        %v845 = vsel %vm844, %v842, -inf
        %846 = vmax.xlane.f32.xlu0 %v845
        %v847 = vpop.xlane.xlu0 %846
        %v848 = vsub.f32 %v842, %v847
        %v849 = vmul.f32 %v848, 1.442695
        %v850 = vpow.pop %v849
        %v851 = vsel %vm844, %v850, 0.0
        %852 = vadd.xlane.f32.xlu0 %v851
        %v853 = vpop.xlane.xlu0 %852
        %v854 = vrcp.pop %v853
        %v855 = vmul.f32 %v850, %v854
        %vm856 = vcmask 39936
        %v858 = vsel %vm856, %v855, 0
        %v861 = vsel %vm650, %v798, 0
        %863 = vmatpush.msra.mxu0 0.0
        %864 = vmatpush.msra.mxu0 0.0
        %865 = vmatpush.msra.mxu0 0.0
        %866 = vmatpush.msra.mxu0 0.0
        %867 = vmatpush.msra.mxu0 0.0
        %868 = vmatpush.msra.mxu0 0.0
        %869 = vmatpush.msra.mxu0 0.0
        %870 = vmatpush.msra.mxu0 0.0
        %871 = vmatpush.msra.mxu0 0.0
        %872 = vmatpush.msra.mxu0 0.0
        %873 = vmatpush.msra.mxu0 0.0
        %874 = vmatpush.msra.mxu0 0.0
        %875 = vmatpush.msra.mxu0 0.0
        %876 = vmatpush.msra.mxu0 0.0
        %877 = vmatpush.msra.mxu0 0.0
        %878 = vmatpush.msra.mxu0 %v861
        %879 = vmatmul.f32.gmra.mxu0 %v858
        %v880 = vpop.f32.mrf.mxu0
        %v881 = vadd.f32 0.0, %v880
        %882 = vdwg.mxu0
        %883 = vrot.lane.b32.xlu0 %v800, 96
        %v884 = vpop.permute.xlu0 %883
        %885 = vrot.lane.b32.xlu0 %v778, 96
        %v886 = vpop.permute.xlu0 %885
        %v887 = vsel %vm817, %v884, 0
        %v889 = vsel %vm817, %v886, 0
        %891 = vmatpush.xpose.msra.mxu0 0.0
        %892 = vmatpush.xpose.msra.mxu0 0.0
        %893 = vmatpush.xpose.msra.mxu0 0.0
        %894 = vmatpush.xpose.msra.mxu0 0.0
        %895 = vmatpush.xpose.msra.mxu0 0.0
        %896 = vmatpush.xpose.msra.mxu0 0.0
        %897 = vmatpush.xpose.msra.mxu0 0.0
        %898 = vmatpush.xpose.msra.mxu0 0.0
        %899 = vmatpush.xpose.msra.mxu0 0.0
        %900 = vmatpush.xpose.msra.mxu0 0.0
        %901 = vmatpush.xpose.msra.mxu0 0.0
        %902 = vmatpush.xpose.msra.mxu0 0.0
        %903 = vmatpush.xpose.msra.mxu0 0.0
        %904 = vmatpush.xpose.msra.mxu0 0.0
        %905 = vmatpush.xpose.msra.mxu0 0.0
        %906 = vmatpush.xpose.msra.mxu0 %v889
        %907 = vmatmul.f32.gmra.mxu0 %v887
        %v908 = vpop.f32.mrf.mxu0
        %v909 = vadd.f32 0.0, %v908
        %910 = vdwg.mxu0
        %v911 = vsel %vm844, %v909, -inf
        %912 = vmax.xlane.f32.xlu0 %v911
        %v913 = vpop.xlane.xlu0 %912
        %v914 = vsub.f32 %v909, %v913
        %v915 = vmul.f32 %v914, 1.442695
        %v916 = vpow.pop %v915
        %v917 = vsel %vm844, %v916, 0.0
        %918 = vadd.xlane.f32.xlu0 %v917
        %v919 = vpop.xlane.xlu0 %918
        %v920 = vrcp.pop %v919
        %v921 = vmul.f32 %v916, %v920
        %922 = vrot.lane.b32.xlu0 %v798, 96
        %v923 = vpop.permute.xlu0 %922
        %v925 = vsel %vm856, %v921, 0
        %v927 = vsel %vm650, %v923, 0
        %929 = vmatpush.msra.mxu0 0.0
        %930 = vmatpush.msra.mxu0 0.0
        %931 = vmatpush.msra.mxu0 0.0
        %932 = vmatpush.msra.mxu0 0.0
        %933 = vmatpush.msra.mxu0 0.0
        %934 = vmatpush.msra.mxu0 0.0
        %935 = vmatpush.msra.mxu0 0.0
        %936 = vmatpush.msra.mxu0 0.0
        %937 = vmatpush.msra.mxu0 0.0
        %938 = vmatpush.msra.mxu0 0.0
        %939 = vmatpush.msra.mxu0 0.0
        %940 = vmatpush.msra.mxu0 0.0
        %941 = vmatpush.msra.mxu0 0.0
        %942 = vmatpush.msra.mxu0 0.0
        %943 = vmatpush.msra.mxu0 0.0
        %944 = vmatpush.msra.mxu0 %v927
        %945 = vmatmul.f32.gmra.mxu0 %v925
        %v946 = vpop.f32.mrf.mxu0
        %v947 = vadd.f32 0.0, %v946
        %948 = vdwg.mxu0
        %v950 = vsel %vm817, %v947, 0
        %952 = vmatpush.msra.mxu0 0.0
        %953 = vmatpush.msra.mxu0 0.0
        %954 = vmatpush.msra.mxu0 0.0
        %955 = vmatpush.msra.mxu0 0.0
        %956 = vmatpush.msra.mxu0 0.0
        %957 = vmatpush.msra.mxu0 0.0
        %958 = vmatpush.msra.mxu0 0.0
        %959 = vmatpush.msra.mxu0 0.0
        %960 = vmatpush.msra.mxu0 0.0
        %961 = vmatpush.msra.mxu0 0.0
        %962 = vmatpush.msra.mxu0 0.0
        %963 = vmatpush.msra.mxu0 0.0
        %964 = vmatpush.msra.mxu0 %v808
        %965 = vmatpush.msra.mxu0 %v807
        %966 = vmatpush.msra.mxu0 %v806
        %967 = vmatpush.msra.mxu0 %v805
        %968 = vmatmul.f32.gmra.mxu0 %v950
        %v969 = vpop.f32.mrf.mxu0
        %v970 = vadd.f32 0.0, %v969
        %971 = vdwg.mxu0
        %v973 = vsel %vm817, %v881, 0
        %975 = vmatpush.msra.mxu0 0.0
        %976 = vmatpush.msra.mxu0 0.0
        %977 = vmatpush.msra.mxu0 0.0
        %978 = vmatpush.msra.mxu0 0.0
        %979 = vmatpush.msra.mxu0 0.0
        %980 = vmatpush.msra.mxu0 0.0
        %981 = vmatpush.msra.mxu0 0.0
        %982 = vmatpush.msra.mxu0 0.0
        %983 = vmatpush.msra.mxu0 0.0
        %984 = vmatpush.msra.mxu0 0.0
        %985 = vmatpush.msra.mxu0 0.0
        %986 = vmatpush.msra.mxu0 0.0
        %987 = vmatpush.msra.mxu0 %v804
        %988 = vmatpush.msra.mxu0 %v803
        %989 = vmatpush.msra.mxu0 %v802
        %990 = vmatpush.msra.mxu0 %v801
        %991 = vmatmul.f32.gmra.mxu0 %v973
        %v992 = vpop.f32.mrf.mxu0
        %v993 = vadd.f32 %v970, %v992
        %994 = vdwg.mxu0
        %995 = vrot.lane.b32.xlu0 %v800, 64
        %v996 = vpop.permute.xlu0 %995
        %997 = vrot.lane.b32.xlu0 %v778, 64
        %v998 = vpop.permute.xlu0 %997
        %v999 = vsel %vm817, %v996, 0
        %v1001 = vsel %vm817, %v998, 0
        %1003 = vmatpush.xpose.msra.mxu0 0.0
        %1004 = vmatpush.xpose.msra.mxu0 0.0
        %1005 = vmatpush.xpose.msra.mxu0 0.0
        %1006 = vmatpush.xpose.msra.mxu0 0.0
        %1007 = vmatpush.xpose.msra.mxu0 0.0
        %1008 = vmatpush.xpose.msra.mxu0 0.0
        %1009 = vmatpush.xpose.msra.mxu0 0.0
        %1010 = vmatpush.xpose.msra.mxu0 0.0
        %1011 = vmatpush.xpose.msra.mxu0 0.0
        %1012 = vmatpush.xpose.msra.mxu0 0.0
        %1013 = vmatpush.xpose.msra.mxu0 0.0
        %1014 = vmatpush.xpose.msra.mxu0 0.0
        %1015 = vmatpush.xpose.msra.mxu0 0.0
        %1016 = vmatpush.xpose.msra.mxu0 0.0
        %1017 = vmatpush.xpose.msra.mxu0 0.0
        %1018 = vmatpush.xpose.msra.mxu0 %v1001
        %1019 = vmatmul.f32.gmra.mxu0 %v999
        %v1020 = vpop.f32.mrf.mxu0
        %v1021 = vadd.f32 0.0, %v1020
        %1022 = vdwg.mxu0
        %v1023 = vsel %vm844, %v1021, -inf
        %1024 = vmax.xlane.f32.xlu0 %v1023
        %v1025 = vpop.xlane.xlu0 %1024
        %v1026 = vsub.f32 %v1021, %v1025
        %v1027 = vmul.f32 %v1026, 1.442695
        %v1028 = vpow.pop %v1027
        %v1029 = vsel %vm844, %v1028, 0.0
        %1030 = vadd.xlane.f32.xlu0 %v1029
        %v1031 = vpop.xlane.xlu0 %1030
        %v1032 = vrcp.pop %v1031
        %v1033 = vmul.f32 %v1028, %v1032
        %1034 = vrot.lane.b32.xlu0 %v798, 64
        %v1035 = vpop.permute.xlu0 %1034
        %v1037 = vsel %vm856, %v1033, 0
        %v1039 = vsel %vm650, %v1035, 0
        %1041 = vmatpush.msra.mxu0 0.0
        %1042 = vmatpush.msra.mxu0 0.0
        %1043 = vmatpush.msra.mxu0 0.0
        %1044 = vmatpush.msra.mxu0 0.0
        %1045 = vmatpush.msra.mxu0 0.0
        %1046 = vmatpush.msra.mxu0 0.0
        %1047 = vmatpush.msra.mxu0 0.0
        %1048 = vmatpush.msra.mxu0 0.0
        %1049 = vmatpush.msra.mxu0 0.0
        %1050 = vmatpush.msra.mxu0 0.0
        %1051 = vmatpush.msra.mxu0 0.0
        %1052 = vmatpush.msra.mxu0 0.0
        %1053 = vmatpush.msra.mxu0 0.0
        %1054 = vmatpush.msra.mxu0 0.0
        %1055 = vmatpush.msra.mxu0 0.0
        %1056 = vmatpush.msra.mxu0 %v1039
        %1057 = vmatmul.f32.gmra.mxu0 %v1037
        %v1058 = vpop.f32.mrf.mxu0
        %v1059 = vadd.f32 0.0, %v1058
        %1060 = vdwg.mxu0
        %v1062 = vsel %vm817, %v1059, 0
        %1064 = vmatpush.msra.mxu0 0.0
        %1065 = vmatpush.msra.mxu0 0.0
        %1066 = vmatpush.msra.mxu0 0.0
        %1067 = vmatpush.msra.mxu0 0.0
        %1068 = vmatpush.msra.mxu0 0.0
        %1069 = vmatpush.msra.mxu0 0.0
        %1070 = vmatpush.msra.mxu0 0.0
        %1071 = vmatpush.msra.mxu0 0.0
        %1072 = vmatpush.msra.mxu0 0.0
        %1073 = vmatpush.msra.mxu0 0.0
        %1074 = vmatpush.msra.mxu0 0.0
        %1075 = vmatpush.msra.mxu0 0.0
        %1076 = vmatpush.msra.mxu0 %v812
        %1077 = vmatpush.msra.mxu0 %v811
        %1078 = vmatpush.msra.mxu0 %v810
        %1079 = vmatpush.msra.mxu0 %v809
        %1080 = vmatmul.f32.gmra.mxu0 %v1062
        %v1081 = vpop.f32.mrf.mxu0
        %v1082 = vadd.f32 0.0, %v1081
        %1083 = vdwg.mxu0
        %v1084 = vadd.f32 %v993, %v1082
        %1085 = vrot.lane.b32.xlu0 %v800, 32
        %v1086 = vpop.permute.xlu0 %1085
        %1087 = vrot.lane.b32.xlu0 %v778, 32
        %v1088 = vpop.permute.xlu0 %1087
        %v1089 = vsel %vm817, %v1086, 0
        %v1091 = vsel %vm817, %v1088, 0
        %1093 = vmatpush.xpose.msra.mxu0 0.0
        %1094 = vmatpush.xpose.msra.mxu0 0.0
        %1095 = vmatpush.xpose.msra.mxu0 0.0
        %1096 = vmatpush.xpose.msra.mxu0 0.0
        %1097 = vmatpush.xpose.msra.mxu0 0.0
        %1098 = vmatpush.xpose.msra.mxu0 0.0
        %1099 = vmatpush.xpose.msra.mxu0 0.0
        %1100 = vmatpush.xpose.msra.mxu0 0.0
        %1101 = vmatpush.xpose.msra.mxu0 0.0
        %1102 = vmatpush.xpose.msra.mxu0 0.0
        %1103 = vmatpush.xpose.msra.mxu0 0.0
        %1104 = vmatpush.xpose.msra.mxu0 0.0
        %1105 = vmatpush.xpose.msra.mxu0 0.0
        %1106 = vmatpush.xpose.msra.mxu0 0.0
        %1107 = vmatpush.xpose.msra.mxu0 0.0
        %1108 = vmatpush.xpose.msra.mxu0 %v1091
        %1109 = vmatmul.f32.gmra.mxu0 %v1089
        %v1110 = vpop.f32.mrf.mxu0
        %v1111 = vadd.f32 0.0, %v1110
        %1112 = vdwg.mxu0
        %v1113 = vsel %vm844, %v1111, -inf
        %1114 = vmax.xlane.f32.xlu0 %v1113
        %v1115 = vpop.xlane.xlu0 %1114
        %v1116 = vsub.f32 %v1111, %v1115
        %v1117 = vmul.f32 %v1116, 1.442695
        %v1118 = vpow.pop %v1117
        %v1119 = vsel %vm844, %v1118, 0.0
        %1120 = vadd.xlane.f32.xlu0 %v1119
        %v1121 = vpop.xlane.xlu0 %1120
        %v1122 = vrcp.pop %v1121
        %v1123 = vmul.f32 %v1118, %v1122
        %1124 = vrot.lane.b32.xlu0 %v798, 32
        %v1125 = vpop.permute.xlu0 %1124
        %v1127 = vsel %vm856, %v1123, 0
        %v1129 = vsel %vm650, %v1125, 0
        %1131 = vmatpush.msra.mxu0 0.0
        %1132 = vmatpush.msra.mxu0 0.0
        %1133 = vmatpush.msra.mxu0 0.0
        %1134 = vmatpush.msra.mxu0 0.0
        %1135 = vmatpush.msra.mxu0 0.0
        %1136 = vmatpush.msra.mxu0 0.0
        %1137 = vmatpush.msra.mxu0 0.0
        %1138 = vmatpush.msra.mxu0 0.0
        %1139 = vmatpush.msra.mxu0 0.0
        %1140 = vmatpush.msra.mxu0 0.0
        %1141 = vmatpush.msra.mxu0 0.0
        %1142 = vmatpush.msra.mxu0 0.0
        %1143 = vmatpush.msra.mxu0 0.0
        %1144 = vmatpush.msra.mxu0 0.0
        %1145 = vmatpush.msra.mxu0 0.0
        %1146 = vmatpush.msra.mxu0 %v1129
        %1147 = vmatmul.f32.gmra.mxu0 %v1127
        %v1148 = vpop.f32.mrf.mxu0
        %v1149 = vadd.f32 0.0, %v1148
        %1150 = vdwg.mxu0
        %v1152 = vsel %vm817, %v1149, 0
        %1154 = vmatpush.msra.mxu0 0.0
        %1155 = vmatpush.msra.mxu0 0.0
        %1156 = vmatpush.msra.mxu0 0.0
        %1157 = vmatpush.msra.mxu0 0.0
        %1158 = vmatpush.msra.mxu0 0.0
        %1159 = vmatpush.msra.mxu0 0.0
        %1160 = vmatpush.msra.mxu0 0.0
        %1161 = vmatpush.msra.mxu0 0.0
        %1162 = vmatpush.msra.mxu0 0.0
        %1163 = vmatpush.msra.mxu0 0.0
        %1164 = vmatpush.msra.mxu0 0.0
        %1165 = vmatpush.msra.mxu0 0.0
        %1166 = vmatpush.msra.mxu0 %v816
        %1167 = vmatpush.msra.mxu0 %v815
        %1168 = vmatpush.msra.mxu0 %v814
        %1169 = vmatpush.msra.mxu0 %v813
        %1170 = vmatmul.f32.gmra.mxu0 %v1152
        %v1171 = vpop.f32.mrf.mxu0
        %v1172 = vadd.f32 0.0, %v1171
        %1173 = vdwg.mxu0
        %v1174 = vadd.f32 %v1084, %v1172
        %v1175 = vadd.f32 %v646, %v1174
        %v1176 = vld [vmem:[%s8] sm:$0x1]
        %v1177 = vperm.slane %v1176, 0
        %v1178 = vadd.f32 %v1175, %v1177
        %v1179 = vld [vmem:[%s9] sm:$0x1]
        %v1180 = vld [vmem:[%s10] sm:$0x1]
        %v1181 = vsel %vm650, %v1178, 0.0
        %1182 = vadd.xlane.f32.xlu0 %v1181
        %v1183 = vpop.xlane.xlu0 %1182
        %v1184 = vmul.f32 %v1183, %v660
        %v1185 = vsub.f32 %v1178, %v1184
        %v1186 = vmul.f32 %v1185, %v1185
        %v1187 = vsel %vm650, %v1186, 0.0
        %1188 = vadd.xlane.f32.xlu0 %v1187
        %v1189 = vpop.xlane.xlu0 %1188
        %v1190 = vmul.f32 %v1189, %v660
        %v1191 = vadd.f32 %v1190, 1e-06
        %v1192 = vrsqrt.pop %v1191
        %v1193 = vmul.f32 %v1192, %v1191
        %v1194 = vmul.f32 %v1193, %v1192
        %v1195 = vmul.f32 0.5, %v1194
        %v1196 = vsub.f32 1.5, %v1195
        %v1197 = vmul.f32 %v1192, %v1196
        %vm1198 = vweird.f32 %v1191
        %vm1199 = vweird.f32 %v1192
        %vm1200 = vmor %vm1198, %vm1199
        %v1201 = vsel %vm1200, %v1192, %v1197
        %v1202 = vmul.f32 %v1185, %v1201
        %v1203 = vperm.slane %v1179, 0
        %v1204 = vmul.f32 %v1202, %v1203
        %v1205 = vperm.slane %v1180, 0
        %v1206 = vadd.f32 %v1204, %v1205
        %v1207 = vld [vmem:[#allocation6] sm:$0xff]
        %v1208 = vld [vmem:[#allocation6 + $0x8] sm:$0xff]
        %v1209 = vld [vmem:[#allocation6 + $0x10] sm:$0xff]
        %v1210 = vld [vmem:[#allocation6 + $0x18] sm:$0xff]
        %v1211 = vld [vmem:[#allocation6 + $0x20] sm:$0xff]
        %v1212 = vld [vmem:[#allocation6 + $0x28] sm:$0xff]
        %v1213 = vld [vmem:[#allocation6 + $0x30] sm:$0xff]
        %v1214 = vld [vmem:[#allocation6 + $0x38] sm:$0xff]
        %v1215 = vld [vmem:[#allocation6 + $0x40] sm:$0xff]
        %v1216 = vld [vmem:[#allocation6 + $0x48] sm:$0xff]
        %v1217 = vld [vmem:[#allocation6 + $0x50] sm:$0xff]
        %v1218 = vld [vmem:[#allocation6 + $0x58] sm:$0xff]
        %v1219 = vld [vmem:[#allocation6 + $0x60] sm:$0xff]
        %v1220 = vld [vmem:[#allocation6 + $0x68] sm:$0xff]
        %v1221 = vld [vmem:[#allocation6 + $0x70] sm:$0xff]
        %v1222 = vld [vmem:[#allocation6 + $0x78] sm:$0xff]
        %v1223 = vld [vmem:[#allocation6 + $0x80] sm:$0xff]
        %v1224 = vld [vmem:[#allocation6 + $0x88] sm:$0xff]
        %v1225 = vld [vmem:[#allocation6 + $0x90] sm:$0xff]
        %v1226 = vld [vmem:[#allocation6 + $0x98] sm:$0xff]
        %v1227 = vld [vmem:[#allocation6 + $0xa0] sm:$0xff]
        %v1228 = vld [vmem:[#allocation6 + $0xa8] sm:$0xff]
        %v1229 = vld [vmem:[#allocation6 + $0xb0] sm:$0xff]
        %v1230 = vld [vmem:[#allocation6 + $0xb8] sm:$0xff]
        %v1231 = vld [vmem:[#allocation6 + $0xc0] sm:$0xff]
        %v1232 = vld [vmem:[#allocation6 + $0xc8] sm:$0xff]
        %v1233 = vld [vmem:[#allocation6 + $0xd0] sm:$0xff]
        %v1234 = vld [vmem:[#allocation6 + $0xd8] sm:$0xff]
        %v1235 = vld [vmem:[#allocation6 + $0xe0] sm:$0xff]
        %v1236 = vld [vmem:[#allocation6 + $0xe8] sm:$0xff]
        %v1237 = vld [vmem:[#allocation6 + $0xf0] sm:$0xff]
        %v1238 = vld [vmem:[#allocation6 + $0xf8] sm:$0xff]
        %v1239 = vld [vmem:[#allocation6 + $0x100] sm:$0xff]
        %v1240 = vld [vmem:[#allocation6 + $0x108] sm:$0xff]
        %v1241 = vld [vmem:[#allocation6 + $0x110] sm:$0xff]
        %v1242 = vld [vmem:[#allocation6 + $0x118] sm:$0xff]
        %v1243 = vld [vmem:[#allocation6 + $0x120] sm:$0xff]
        %v1244 = vld [vmem:[#allocation6 + $0x128] sm:$0xff]
        %v1245 = vld [vmem:[#allocation6 + $0x130] sm:$0xff]
        %v1246 = vld [vmem:[#allocation6 + $0x138] sm:$0xff]
        %v1247 = vld [vmem:[#allocation6 + $0x140] sm:$0xff]
        %v1248 = vld [vmem:[#allocation6 + $0x148] sm:$0xff]
        %v1249 = vld [vmem:[#allocation6 + $0x150] sm:$0xff]
        %v1250 = vld [vmem:[#allocation6 + $0x158] sm:$0xff]
        %v1251 = vld [vmem:[#allocation6 + $0x160] sm:$0xff]
        %v1252 = vld [vmem:[#allocation6 + $0x168] sm:$0xff]
        %v1253 = vld [vmem:[#allocation6 + $0x170] sm:$0xff]
        %v1254 = vld [vmem:[#allocation6 + $0x178] sm:$0xff]
        %v1255 = vld [vmem:[#allocation6 + $0x180] sm:$0xff]
        %v1256 = vld [vmem:[#allocation6 + $0x188] sm:$0xff]
        %v1257 = vld [vmem:[#allocation6 + $0x190] sm:$0xff]
        %v1258 = vld [vmem:[#allocation6 + $0x198] sm:$0xff]
        %v1259 = vld [vmem:[#allocation6 + $0x1a0] sm:$0xff]
        %v1260 = vld [vmem:[#allocation6 + $0x1a8] sm:$0xff]
        %v1261 = vld [vmem:[#allocation6 + $0x1b0] sm:$0xff]
        %v1262 = vld [vmem:[#allocation6 + $0x1b8] sm:$0xff]
        %v1263 = vld [vmem:[#allocation6 + $0x1c0] sm:$0xff]
        %v1264 = vld [vmem:[#allocation6 + $0x1c8] sm:$0xff]
        %v1265 = vld [vmem:[#allocation6 + $0x1d0] sm:$0xff]
        %v1266 = vld [vmem:[#allocation6 + $0x1d8] sm:$0xff]
        %v1267 = vld [vmem:[#allocation6 + $0x1e0] sm:$0xff]
        %v1268 = vld [vmem:[#allocation6 + $0x1e8] sm:$0xff]
        %v1269 = vld [vmem:[#allocation6 + $0x1f0] sm:$0xff]
        %v1270 = vld [vmem:[#allocation6 + $0x1f8] sm:$0xff]
        %v1271 = vld [vmem:[%s12] ss:$2 sm:$0xf]
        %v1273 = vperm.slane %v1271, 0
        %v1274 = vperm.slane %v1271, 1
        %v1275 = vperm.slane %v1271, 2
        %v1276 = vperm.slane %v1271, 3
        %1281 = vmatpush.msra.mxu0 %v1267
        %1282 = vmatpush.msra.mxu0 %v1263
        %1283 = vmatpush.msra.mxu0 %v1259
        %1284 = vmatpush.msra.mxu0 %v1255
        %1285 = vmatpush.msra.mxu0 %v1251
        %1286 = vmatpush.msra.mxu0 %v1247
        %1287 = vmatpush.msra.mxu0 %v1243
        %1288 = vmatpush.msra.mxu0 %v1239
        %1289 = vmatpush.msra.mxu0 %v1235
        %1290 = vmatpush.msra.mxu0 %v1231
        %1291 = vmatpush.msra.mxu0 %v1227
        %1292 = vmatpush.msra.mxu0 %v1223
        %1293 = vmatpush.msra.mxu0 %v1219
        %1294 = vmatpush.msra.mxu0 %v1215
        %1295 = vmatpush.msra.mxu0 %v1211
        %1296 = vmatpush.msra.mxu0 %v1207
        %1297 = vmatmul.f32.gmra.mxu0 %v1206
        %v1298 = vpop.f32.mrf.mxu0
        %v1299 = vadd.f32 %v1273, %v1298
        %1300 = vdwg.mxu0
        %1301 = vmatpush.msra.mxu0 %v1268
        %1302 = vmatpush.msra.mxu0 %v1264
        %1303 = vmatpush.msra.mxu0 %v1260
        %1304 = vmatpush.msra.mxu0 %v1256
        %1305 = vmatpush.msra.mxu0 %v1252
        %1306 = vmatpush.msra.mxu0 %v1248
        %1307 = vmatpush.msra.mxu0 %v1244
        %1308 = vmatpush.msra.mxu0 %v1240
        %1309 = vmatpush.msra.mxu0 %v1236
        %1310 = vmatpush.msra.mxu0 %v1232
        %1311 = vmatpush.msra.mxu0 %v1228
        %1312 = vmatpush.msra.mxu0 %v1224
        %1313 = vmatpush.msra.mxu0 %v1220
        %1314 = vmatpush.msra.mxu0 %v1216
        %1315 = vmatpush.msra.mxu0 %v1212
        %1316 = vmatpush.msra.mxu0 %v1208
        %1317 = vmatmul.f32.gmra.mxu0 %v1206
        %v1318 = vpop.f32.mrf.mxu0
        %v1319 = vadd.f32 %v1274, %v1318
        %1320 = vdwg.mxu0
        %1321 = vmatpush.msra.mxu0 %v1269
        %1322 = vmatpush.msra.mxu0 %v1265
        %1323 = vmatpush.msra.mxu0 %v1261
        %1324 = vmatpush.msra.mxu0 %v1257
        %1325 = vmatpush.msra.mxu0 %v1253
        %1326 = vmatpush.msra.mxu0 %v1249
        %1327 = vmatpush.msra.mxu0 %v1245
        %1328 = vmatpush.msra.mxu0 %v1241
        %1329 = vmatpush.msra.mxu0 %v1237
        %1330 = vmatpush.msra.mxu0 %v1233
        %1331 = vmatpush.msra.mxu0 %v1229
        %1332 = vmatpush.msra.mxu0 %v1225
        %1333 = vmatpush.msra.mxu0 %v1221
        %1334 = vmatpush.msra.mxu0 %v1217
        %1335 = vmatpush.msra.mxu0 %v1213
        %1336 = vmatpush.msra.mxu0 %v1209
        %1337 = vmatmul.f32.gmra.mxu0 %v1206
        %v1338 = vpop.f32.mrf.mxu0
        %v1339 = vadd.f32 %v1275, %v1338
        %1340 = vdwg.mxu0
        %1341 = vmatpush.msra.mxu0 %v1270
        %1342 = vmatpush.msra.mxu0 %v1266
        %1343 = vmatpush.msra.mxu0 %v1262
        %1344 = vmatpush.msra.mxu0 %v1258
        %1345 = vmatpush.msra.mxu0 %v1254
        %1346 = vmatpush.msra.mxu0 %v1250
        %1347 = vmatpush.msra.mxu0 %v1246
        %1348 = vmatpush.msra.mxu0 %v1242
        %1349 = vmatpush.msra.mxu0 %v1238
        %1350 = vmatpush.msra.mxu0 %v1234
        %1351 = vmatpush.msra.mxu0 %v1230
        %1352 = vmatpush.msra.mxu0 %v1226
        %1353 = vmatpush.msra.mxu0 %v1222
        %1354 = vmatpush.msra.mxu0 %v1218
        %1355 = vmatpush.msra.mxu0 %v1214
        %1356 = vmatpush.msra.mxu0 %v1210
        %1357 = vmatmul.f32.gmra.mxu0 %v1206
        %v1358 = vpop.f32.mrf.mxu0
        %v1359 = vadd.f32 %v1276, %v1358
        %1360 = vdwg.mxu0
        %v1361 = vmul.f32 %v1299, 0.5
        %v1362 = vmul.f32 %v1319, 0.5
        %v1363 = vmul.f32 %v1339, 0.5
        %v1364 = vmul.f32 %v1359, 0.5
        %v1365 = vmul.f32 %v1299, 0.044715
        %v1366 = vmul.f32 %v1319, 0.044715
        %v1367 = vmul.f32 %v1339, 0.044715
        %v1368 = vmul.f32 %v1359, 0.044715
        %v1369 = vmul.f32 %v1365, %v1299
        %v1370 = vmul.f32 %v1366, %v1319
        %v1371 = vmul.f32 %v1367, %v1339
        %v1372 = vmul.f32 %v1368, %v1359
        %v1373 = vmul.f32 %v1369, %v1299
        %v1374 = vmul.f32 %v1370, %v1319
        %v1375 = vmul.f32 %v1371, %v1339
        %v1376 = vmul.f32 %v1372, %v1359
        %v1377 = vadd.f32 %v1299, %v1373
        %v1378 = vadd.f32 %v1319, %v1374
        %v1379 = vadd.f32 %v1339, %v1375
        %v1380 = vadd.f32 %v1359, %v1376
        %v1381 = vmul.f32 %v1377, 0.7978846
        %v1382 = vmul.f32 %v1378, 0.7978846
        %v1383 = vmul.f32 %v1379, 0.7978846
        %v1384 = vmul.f32 %v1380, 0.7978846
        %v1385 = vtanh.pop %v1381
        %v1386 = vtanh.pop %v1382
        %v1387 = vtanh.pop %v1383
        %v1388 = vtanh.pop %v1384
        %v1389 = vadd.f32 %v1385, 1.0
        %v1390 = vadd.f32 %v1386, 1.0
        %v1391 = vadd.f32 %v1387, 1.0
        %v1392 = vadd.f32 %v1388, 1.0
        %v1393 = vmul.f32 %v1361, %v1389
        %v1394 = vmul.f32 %v1362, %v1390
        %v1395 = vmul.f32 %v1363, %v1391
        %v1396 = vmul.f32 %v1364, %v1392
        %v1397 = vld [vmem:[#allocation7] sm:$0xff]
        %v1398 = vld [vmem:[#allocation7 + $0x8] sm:$0xff]
        %v1399 = vld [vmem:[#allocation7 + $0x10] sm:$0xff]
        %v1400 = vld [vmem:[#allocation7 + $0x18] sm:$0xff]
        %v1401 = vld [vmem:[#allocation7 + $0x20] sm:$0xff]
        %v1402 = vld [vmem:[#allocation7 + $0x28] sm:$0xff]
        %v1403 = vld [vmem:[#allocation7 + $0x30] sm:$0xff]
        %v1404 = vld [vmem:[#allocation7 + $0x38] sm:$0xff]
        %v1405 = vld [vmem:[#allocation7 + $0x40] sm:$0xff]
        %v1406 = vld [vmem:[#allocation7 + $0x48] sm:$0xff]
        %v1407 = vld [vmem:[#allocation7 + $0x50] sm:$0xff]
        %v1408 = vld [vmem:[#allocation7 + $0x58] sm:$0xff]
        %v1409 = vld [vmem:[#allocation7 + $0x60] sm:$0xff]
        %v1410 = vld [vmem:[#allocation7 + $0x68] sm:$0xff]
        %v1411 = vld [vmem:[#allocation7 + $0x70] sm:$0xff]
        %v1412 = vld [vmem:[#allocation7 + $0x78] sm:$0xff]
        %v1413 = vld [vmem:[#allocation7 + $0x80] sm:$0xff]
        %v1414 = vld [vmem:[#allocation7 + $0x88] sm:$0xff]
        %v1415 = vld [vmem:[#allocation7 + $0x90] sm:$0xff]
        %v1416 = vld [vmem:[#allocation7 + $0x98] sm:$0xff]
        %v1417 = vld [vmem:[#allocation7 + $0xa0] sm:$0xff]
        %v1418 = vld [vmem:[#allocation7 + $0xa8] sm:$0xff]
        %v1419 = vld [vmem:[#allocation7 + $0xb0] sm:$0xff]
        %v1420 = vld [vmem:[#allocation7 + $0xb8] sm:$0xff]
        %v1421 = vld [vmem:[#allocation7 + $0xc0] sm:$0xff]
        %v1422 = vld [vmem:[#allocation7 + $0xc8] sm:$0xff]
        %v1423 = vld [vmem:[#allocation7 + $0xd0] sm:$0xff]
        %v1424 = vld [vmem:[#allocation7 + $0xd8] sm:$0xff]
        %v1425 = vld [vmem:[#allocation7 + $0xe0] sm:$0xff]
        %v1426 = vld [vmem:[#allocation7 + $0xe8] sm:$0xff]
        %v1427 = vld [vmem:[#allocation7 + $0xf0] sm:$0xff]
        %v1428 = vld [vmem:[#allocation7 + $0xf8] sm:$0xff]
        %v1429 = vld [vmem:[#allocation7 + $0x100] sm:$0xff]
        %v1430 = vld [vmem:[#allocation7 + $0x108] sm:$0xff]
        %v1431 = vld [vmem:[#allocation7 + $0x110] sm:$0xff]
        %v1432 = vld [vmem:[#allocation7 + $0x118] sm:$0xff]
        %v1433 = vld [vmem:[#allocation7 + $0x120] sm:$0xff]
        %v1434 = vld [vmem:[#allocation7 + $0x128] sm:$0xff]
        %v1435 = vld [vmem:[#allocation7 + $0x130] sm:$0xff]
        %v1436 = vld [vmem:[#allocation7 + $0x138] sm:$0xff]
        %v1437 = vld [vmem:[#allocation7 + $0x140] sm:$0xff]
        %v1438 = vld [vmem:[#allocation7 + $0x148] sm:$0xff]
        %v1439 = vld [vmem:[#allocation7 + $0x150] sm:$0xff]
        %v1440 = vld [vmem:[#allocation7 + $0x158] sm:$0xff]
        %v1441 = vld [vmem:[#allocation7 + $0x160] sm:$0xff]
        %v1442 = vld [vmem:[#allocation7 + $0x168] sm:$0xff]
        %v1443 = vld [vmem:[#allocation7 + $0x170] sm:$0xff]
        %v1444 = vld [vmem:[#allocation7 + $0x178] sm:$0xff]
        %v1445 = vld [vmem:[#allocation7 + $0x180] sm:$0xff]
        %v1446 = vld [vmem:[#allocation7 + $0x188] sm:$0xff]
        %v1447 = vld [vmem:[#allocation7 + $0x190] sm:$0xff]
        %v1448 = vld [vmem:[#allocation7 + $0x198] sm:$0xff]
        %v1449 = vld [vmem:[#allocation7 + $0x1a0] sm:$0xff]
        %v1450 = vld [vmem:[#allocation7 + $0x1a8] sm:$0xff]
        %v1451 = vld [vmem:[#allocation7 + $0x1b0] sm:$0xff]
        %v1452 = vld [vmem:[#allocation7 + $0x1b8] sm:$0xff]
        %v1453 = vld [vmem:[#allocation7 + $0x1c0] sm:$0xff]
        %v1454 = vld [vmem:[#allocation7 + $0x1c8] sm:$0xff]
        %v1455 = vld [vmem:[#allocation7 + $0x1d0] sm:$0xff]
        %v1456 = vld [vmem:[#allocation7 + $0x1d8] sm:$0xff]
        %v1457 = vld [vmem:[#allocation7 + $0x1e0] sm:$0xff]
        %v1458 = vld [vmem:[#allocation7 + $0x1e8] sm:$0xff]
        %v1459 = vld [vmem:[#allocation7 + $0x1f0] sm:$0xff]
        %v1460 = vld [vmem:[#allocation7 + $0x1f8] sm:$0xff]
        %1461 = vmatpush.msra.mxu0 %v1412
        %1462 = vmatpush.msra.mxu0 %v1411
        %1463 = vmatpush.msra.mxu0 %v1410
        %1464 = vmatpush.msra.mxu0 %v1409
        %1465 = vmatpush.msra.mxu0 %v1408
        %1466 = vmatpush.msra.mxu0 %v1407
        %1467 = vmatpush.msra.mxu0 %v1406
        %1468 = vmatpush.msra.mxu0 %v1405
        %1469 = vmatpush.msra.mxu0 %v1404
        %1470 = vmatpush.msra.mxu0 %v1403
        %1471 = vmatpush.msra.mxu0 %v1402
        %1472 = vmatpush.msra.mxu0 %v1401
        %1473 = vmatpush.msra.mxu0 %v1400
        %1474 = vmatpush.msra.mxu0 %v1399
        %1475 = vmatpush.msra.mxu0 %v1398
        %1476 = vmatpush.msra.mxu0 %v1397
        %1477 = vmatmul.f32.gmra.mxu0 %v1393
        %v1478 = vpop.f32.mrf.mxu0
        %v1479 = vadd.f32 0.0, %v1478
        %1480 = vdwg.mxu0
        %1481 = vmatpush.msra.mxu0 %v1428
        %1482 = vmatpush.msra.mxu0 %v1427
        %1483 = vmatpush.msra.mxu0 %v1426
        %1484 = vmatpush.msra.mxu0 %v1425
        %1485 = vmatpush.msra.mxu0 %v1424
        %1486 = vmatpush.msra.mxu0 %v1423
        %1487 = vmatpush.msra.mxu0 %v1422
        %1488 = vmatpush.msra.mxu0 %v1421
        %1489 = vmatpush.msra.mxu0 %v1420
        %1490 = vmatpush.msra.mxu0 %v1419
        %1491 = vmatpush.msra.mxu0 %v1418
        %1492 = vmatpush.msra.mxu0 %v1417
        %1493 = vmatpush.msra.mxu0 %v1416
        %1494 = vmatpush.msra.mxu0 %v1415
        %1495 = vmatpush.msra.mxu0 %v1414
        %1496 = vmatpush.msra.mxu0 %v1413
        %1497 = vmatmul.f32.gmra.mxu0 %v1394
        %v1498 = vpop.f32.mrf.mxu0
        %v1499 = vadd.f32 %v1479, %v1498
        %1500 = vdwg.mxu0
        %1501 = vmatpush.msra.mxu0 %v1444
        %1502 = vmatpush.msra.mxu0 %v1443
        %1503 = vmatpush.msra.mxu0 %v1442
        %1504 = vmatpush.msra.mxu0 %v1441
        %1505 = vmatpush.msra.mxu0 %v1440
        %1506 = vmatpush.msra.mxu0 %v1439
        %1507 = vmatpush.msra.mxu0 %v1438
        %1508 = vmatpush.msra.mxu0 %v1437
        %1509 = vmatpush.msra.mxu0 %v1436
        %1510 = vmatpush.msra.mxu0 %v1435
        %1511 = vmatpush.msra.mxu0 %v1434
        %1512 = vmatpush.msra.mxu0 %v1433
        %1513 = vmatpush.msra.mxu0 %v1432
        %1514 = vmatpush.msra.mxu0 %v1431
        %1515 = vmatpush.msra.mxu0 %v1430
        %1516 = vmatpush.msra.mxu0 %v1429
        %1517 = vmatmul.f32.gmra.mxu0 %v1395
        %v1518 = vpop.f32.mrf.mxu0
        %v1519 = vadd.f32 %v1499, %v1518
        %1520 = vdwg.mxu0
        %1521 = vmatpush.msra.mxu0 %v1460
        %1522 = vmatpush.msra.mxu0 %v1459
        %1523 = vmatpush.msra.mxu0 %v1458
        %1524 = vmatpush.msra.mxu0 %v1457
        %1525 = vmatpush.msra.mxu0 %v1456
        %1526 = vmatpush.msra.mxu0 %v1455
        %1527 = vmatpush.msra.mxu0 %v1454
        %1528 = vmatpush.msra.mxu0 %v1453
        %1529 = vmatpush.msra.mxu0 %v1452
        %1530 = vmatpush.msra.mxu0 %v1451
        %1531 = vmatpush.msra.mxu0 %v1450
        %1532 = vmatpush.msra.mxu0 %v1449
        %1533 = vmatpush.msra.mxu0 %v1448
        %1534 = vmatpush.msra.mxu0 %v1447
        %1535 = vmatpush.msra.mxu0 %v1446
        %1536 = vmatpush.msra.mxu0 %v1445
        %1537 = vmatmul.f32.gmra.mxu0 %v1396
        %v1538 = vpop.f32.mrf.mxu0
        %v1539 = vadd.f32 %v1519, %v1538
        %1540 = vdwg.mxu0
        %v1541 = vadd.f32 %v1178, %v1539
        %v1542 = vld [vmem:[%s14] sm:$0x1]
        %v1543 = vperm.slane %v1542, 0
        %v1544 = vadd.f32 %v1541, %v1543
        %v1545 = vld [vmem:[%s3 + $0x1] sm:$0x1]
        %v1546 = vld [vmem:[%s4 + $0x1] sm:$0x1]
        %v1547 = vsel %vm650, %v1544, 0.0
        %1548 = vadd.xlane.f32.xlu0 %v1547
        %v1549 = vpop.xlane.xlu0 %1548
        %v1550 = vmul.f32 %v1549, %v660
        %v1551 = vsub.f32 %v1544, %v1550
        %v1552 = vmul.f32 %v1551, %v1551
        %v1553 = vsel %vm650, %v1552, 0.0
        %1554 = vadd.xlane.f32.xlu0 %v1553
        %v1555 = vpop.xlane.xlu0 %1554
        %v1556 = vmul.f32 %v1555, %v660
        %v1557 = vadd.f32 %v1556, 1e-06
        %v1558 = vrsqrt.pop %v1557
        %v1559 = vmul.f32 %v1558, %v1557
        %v1560 = vmul.f32 %v1559, %v1558
        %v1561 = vmul.f32 0.5, %v1560
        %v1562 = vsub.f32 1.5, %v1561
        %v1563 = vmul.f32 %v1558, %v1562
        %vm1564 = vweird.f32 %v1557
        %vm1565 = vweird.f32 %v1558
        %vm1566 = vmor %vm1564, %vm1565
        %v1567 = vsel %vm1566, %v1558, %v1563
        %v1568 = vmul.f32 %v1551, %v1567
        %v1569 = vperm.slane %v1545, 0
        %v1570 = vmul.f32 %v1568, %v1569
        %v1571 = vperm.slane %v1546, 0
        %v1572 = vadd.f32 %v1570, %v1571
        %s1573 = scalar_lea.vmem %s5, 384
        %v1574 = vld [vmem:[%s1573 + $0x8] sm:$0xff]
        %v1575 = vld [vmem:[%s1573 + $0x20] sm:$0xff]
        %v1576 = vld [vmem:[%s1573 + $0x38] sm:$0xff]
        %v1577 = vld [vmem:[%s1573 + $0x50] sm:$0xff]
        %v1578 = vld [vmem:[%s1573 + $0x68] sm:$0xff]
        %v1579 = vld [vmem:[%s1573 + $0x80] sm:$0xff]
        %v1580 = vld [vmem:[%s1573 + $0x98] sm:$0xff]
        %v1581 = vld [vmem:[%s1573 + $0xb0] sm:$0xff]
        %v1582 = vld [vmem:[%s1573 + $0xc8] sm:$0xff]
        %v1583 = vld [vmem:[%s1573 + $0xe0] sm:$0xff]
        %v1584 = vld [vmem:[%s1573 + $0xf8] sm:$0xff]
        %v1585 = vld [vmem:[%s1573 + $0x110] sm:$0xff]
        %v1586 = vld [vmem:[%s1573 + $0x128] sm:$0xff]
        %v1587 = vld [vmem:[%s1573 + $0x140] sm:$0xff]
        %v1588 = vld [vmem:[%s1573 + $0x158] sm:$0xff]
        %v1589 = vld [vmem:[%s1573 + $0x170] sm:$0xff]
        %s1590 = scalar_lea.vmem %s6, 1
        %v1591 = vld [vmem:[%s1590] ss:$2 sm:$0x7]
        %v1593 = vperm.slane %v1591, 1
        %1595 = vmatpush.msra.mxu0 %v1589
        %1596 = vmatpush.msra.mxu0 %v1588
        %1597 = vmatpush.msra.mxu0 %v1587
        %1598 = vmatpush.msra.mxu0 %v1586
        %1599 = vmatpush.msra.mxu0 %v1585
        %1600 = vmatpush.msra.mxu0 %v1584
        %1601 = vmatpush.msra.mxu0 %v1583
        %1602 = vmatpush.msra.mxu0 %v1582
        %1603 = vmatpush.msra.mxu0 %v1581
        %1604 = vmatpush.msra.mxu0 %v1580
        %1605 = vmatpush.msra.mxu0 %v1579
        %1606 = vmatpush.msra.mxu0 %v1578
        %1607 = vmatpush.msra.mxu0 %v1577
        %1608 = vmatpush.msra.mxu0 %v1576
        %1609 = vmatpush.msra.mxu0 %v1575
        %1610 = vmatpush.msra.mxu0 %v1574
        %1611 = vmatmul.f32.gmra.mxu0 %v1572
        %v1612 = vpop.f32.mrf.mxu0
        %v1613 = vadd.f32 %v1593, %v1612
        %1614 = vdwg.mxu0
        %1615 = vst [vmem:[%s576] sm:$0x1f] %v1613
        %p1616 = scmp.lt.s32.totalorder %s29, 1
        %s1617 = scalar_select %p1616, %s29, 1
        %s1618 = smul.addr %s1617, 8
        %s1619 = scalar_lea.vmem %s15, %s1618
        // Predicated region
        $region97: #{dino_vit_forward.1} parent=79 // pred_check
          %p1620 = pneg %p372
        $region98: #{dino_vit_forward.1} parent=79 // pred_check_branch
          %1622 = sbr.rel (%p1620) target = $region100
        $region99: #{dino_vit_forward.1} parent=79 // pred_region
          _
        $region100: #{dino_vit_forward.1} parent=79 // pred_fallthru
          _
      $region80: #{dino_vit_forward.1} parent=5 // pred_fallthru
        _
      %p1623 = scmp.le.s32.totalorder 2, %s24
      // Predicated region
      $region101: #{dino_vit_forward.1} parent=5 // pred_check
        %p1624 = pneg %p1623
      $region102: #{dino_vit_forward.1} parent=5 // pred_check_branch
        %1626 = sbr.rel (%p1624) target = $region104
      $region103: #{dino_vit_forward.1} parent=5 // pred_region
        %s1627 = ssub.s32 %s24, 2
        // Predicated region
        $region105: #{dino_vit_forward.1} parent=103 // pred_check
          %p1628 = pneg %p378
        $region106: #{dino_vit_forward.1} parent=103 // pred_check_branch
          %1630 = sbr.rel (%p1628) target = $region108
        $region107: #{dino_vit_forward.1} parent=103 // pred_region
          %p1631 = scmp.lt.s32.totalorder %s30, 1
          %s1632 = scalar_select %p1631, %s30, 1
          %s1633 = smul.addr %s1632, 8
          %s1634 = scalar_lea.vmem %s15, %s1633
        $region108: #{dino_vit_forward.1} parent=103 // pred_fallthru
          _
      $region104: #{dino_vit_forward.1} parent=5 // pred_fallthru
        _
    $region6: #{dino_vit_forward.1} parent=1 // loop_footer
      %s28 = sadd.s32 1, %s24
    $region7: #{dino_vit_forward.1} parent=1 // loop_footer_branch
      %23 = sbr.rel target = $region3
    $region8: #{dino_vit_forward.1} parent=1 // loop_exit
      _
    %1635 = vsyncpa [#allocation3], 1
    %s1636 = scalar_lea.sflag [#allocation3], 1
    %1637 = vsyncpa %s1636, 1
    %1638 = vsyncpa [#allocation5], 1
    %1639 = vsyncpa [#allocation8], 1

</llo_original>
